<compile_context>
chip_gen: v6e
topology: v6e:2x2x1
jax: 0.10.0
libtpu: 0.0.40
codegen_flags: <defaults>
</compile_context>

<pallas_src>
import jax
import jax.numpy as jnp
from jax.experimental import pallas as pl
from jax.experimental.pallas import tpu as pltpu

# ---- problem sizes (small, consistent with the module's forward) -----------
IMAGE_SIZE = 32      # prompted image spatial size
PAD_SIZE = 4         # reprogrammer pad width
PATCH = 8            # patch-embed patch size
EMBED = 32           # embedding dim
CIN = 3              # image channels
BATCH = 2
HP = WP = IMAGE_SIZE // PATCH
NTOK = HP * WP       # image tokens (16)
PDIM = CIN * PATCH * PATCH  # flattened patch dim (192)
NPROMPT = 3          # mask token + 2 box-corner tokens


# =========================== fused Pallas kernel =============================

def _repsam_fused_kernel(
    patches_ref, tokens_ref,
    w_pe_ref, b_pe_ref, pos_ref, ln_ref,
    w_qkv_ref, b_qkv_ref, wo_ref, bo_ref,
    w1_ref, b1_ref, w2_ref, b2_ref,
    wq2_ref, bq2_ref, wk2_ref, bk2_ref, wv2_ref, bv2_ref,
    wh_ref, bh_ref,
    no_mask_ref, pe_img_ref,
    out_ref,
):
  """One grid step == one batch element; everything stays in VMEM/vregs."""
  f32 = jnp.float32
  bf16 = jnp.bfloat16

  def mm(a, b):
    # bf16 operands on the MXU, f32 accumulation.
    return jnp.dot(a.astype(bf16), b.astype(bf16), preferred_element_type=f32)

  def mm_t(a, b):
    # a @ b.T without materializing the transpose (contract last dims).
    return jax.lax.dot_general(
        a.astype(bf16), b.astype(bf16),
        dimension_numbers=(((1,), (1,)), ((), ())),
        preferred_element_type=f32)

  def layer_norm(x, g, b):
    mu = jnp.mean(x, axis=-1, keepdims=True)
    var = jnp.mean((x - mu) ** 2, axis=-1, keepdims=True)
    return (x - mu) * jax.lax.rsqrt(var + 1e-6) * g + b

  def softmax(s):
    m = jnp.max(s, axis=-1, keepdims=True)
    p = jnp.exp(s - m)
    denom = jnp.sum(p, axis=-1, keepdims=True)
    return p * pl.reciprocal(denom, approx=True)   # divide on the EUP slot

  scale = f32(1.0) / jnp.sqrt(f32(EMBED))
  lnp = ln_ref[...]                                     # (4, EMBED) f32

  # ---------------- image encoder: patch embed + 1 transformer block --------
  patches = patches_ref[0]                              # (NTOK, PDIM) bf16
  tok = mm(patches, w_pe_ref[...]) + b_pe_ref[...]      # (NTOK, EMBED) f32
  tok = tok + pos_ref[...]

  t = layer_norm(tok, lnp[0:1, :], lnp[1:2, :])
  qkv = mm(t, w_qkv_ref[...]) + b_qkv_ref[...]          # (NTOK, 3*EMBED), fused QKV
  q = qkv[:, 0:EMBED]
  k = qkv[:, EMBED:2 * EMBED]
  v = qkv[:, 2 * EMBED:3 * EMBED]
  s = mm_t(q, k) * scale                                # (NTOK, NTOK)
  a = mm(softmax(s), v)                                 # (NTOK, EMBED)
  a = mm(a, wo_ref[...]) + bo_ref[...]
  tok = tok + a

  t2 = layer_norm(tok, lnp[2:3, :], lnp[3:4, :])
  h = jax.nn.gelu(mm(t2, w1_ref[...]) + b1_ref[...], approximate=True)  # (NTOK, 4E)
  tok = tok + mm(h, w2_ref[...]) + b2_ref[...]          # image features

  # ---------------- mask decoder: cross-attn + hypernet + dot-product head --
  src = tok + no_mask_ref[...]                          # + dense no-mask embedding
  toks = tokens_ref[0]                                  # (NPROMPT, EMBED): mask tok + corners
  q2 = mm(toks, wq2_ref[...]) + bq2_ref[...]            # (NPROMPT, EMBED)
  k2 = mm(src + pe_img_ref[...], wk2_ref[...]) + bk2_ref[...]   # (NTOK, EMBED)
  v2 = mm(src, wv2_ref[...]) + bv2_ref[...]             # (NTOK, EMBED)
  s2 = mm_t(q2, k2) * scale                             # (NPROMPT, NTOK)
  attn = mm(softmax(s2), v2)                            # (NPROMPT, EMBED)

  hyper = mm(attn[0:1, :], wh_ref[...]) + bh_ref[...]   # (1, EMBED) hypernet output
  logits = mm_t(hyper, src)                             # (1, NTOK) matvec on the MXU
  out_ref[...] = logits.reshape(1, 1, NTOK)


# ================================ glue (JAX) =================================

def fourier_pos_encode(coords01, gauss):
  """SAM-style random Fourier positional encoding. coords01 in [0,1], (..., 2)."""
  c = 2.0 * coords01 - 1.0
  proj = 2.0 * jnp.pi * (c @ gauss)                     # (..., EMBED//2)
  return jnp.concatenate([jnp.sin(proj), jnp.cos(proj)], axis=-1)


def init_params(key):
  ks = jax.random.split(key, 16)
  s = 0.02
  p = {}
  # reprogrammer: learnable padding prompt (zero in the interior)
  pad_full = s * jax.random.normal(ks[0], (CIN, IMAGE_SIZE, IMAGE_SIZE), jnp.float32)
  idx = jnp.arange(IMAGE_SIZE)
  border = (idx < PAD_SIZE) | (idx >= IMAGE_SIZE - PAD_SIZE)
  mask = (border[:, None] | border[None, :]).astype(jnp.float32)
  p["prompt"] = pad_full * mask[None]
  # image encoder
  p["w_pe"] = s * jax.random.normal(ks[1], (PDIM, EMBED), jnp.float32)
  p["b_pe"] = jnp.zeros((EMBED,), jnp.float32)
  p["pos_emb"] = s * jax.random.normal(ks[2], (NTOK, EMBED), jnp.float32)
  p["w_qkv"] = s * jax.random.normal(ks[3], (EMBED, 3 * EMBED), jnp.float32)  # fused QKV
  p["b_qkv"] = jnp.zeros((3 * EMBED,), jnp.float32)
  p["wo"] = s * jax.random.normal(ks[4], (EMBED, EMBED), jnp.float32)
  p["bo"] = jnp.zeros((EMBED,), jnp.float32)
  p["w1"] = s * jax.random.normal(ks[5], (EMBED, 4 * EMBED), jnp.float32)
  p["b1"] = jnp.zeros((4 * EMBED,), jnp.float32)
  p["w2"] = s * jax.random.normal(ks[6], (4 * EMBED, EMBED), jnp.float32)
  p["b2"] = jnp.zeros((EMBED,), jnp.float32)
  p["ln"] = jnp.stack([jnp.ones((EMBED,)), jnp.zeros((EMBED,)),
                       jnp.ones((EMBED,)), jnp.zeros((EMBED,))]).astype(jnp.float32)
  # prompt encoder
  p["pe_gauss"] = jax.random.normal(ks[7], (2, EMBED // 2), jnp.float32)
  p["corner_embed"] = s * jax.random.normal(ks[8], (2, EMBED), jnp.float32)
  p["no_mask"] = s * jax.random.normal(ks[9], (EMBED,), jnp.float32)
  # mask decoder
  p["mask_token"] = s * jax.random.normal(ks[10], (EMBED,), jnp.float32)
  p["wq2"] = s * jax.random.normal(ks[11], (EMBED, EMBED), jnp.float32)
  p["bq2"] = jnp.zeros((EMBED,), jnp.float32)
  p["wk2"] = s * jax.random.normal(ks[12], (EMBED, EMBED), jnp.float32)
  p["bk2"] = jnp.zeros((EMBED,), jnp.float32)
  p["wv2"] = s * jax.random.normal(ks[13], (EMBED, EMBED), jnp.float32)
  p["bv2"] = jnp.zeros((EMBED,), jnp.float32)
  p["wh"] = s * jax.random.normal(ks[14], (EMBED, EMBED), jnp.float32)
  p["bh"] = jnp.zeros((EMBED,), jnp.float32)
  return p


@jax.jit
def repsam_forward(params, x, bbox_tensor):
  """x: (B, 3, H, W) NCHW fp32; bbox_tensor: (B, 4) fp32 xyxy in pixels."""
  B = x.shape[0]

  # ---- reprogrammer + patchify (plain JAX; XLA fuses add + reshape) ----
  prompted = x + params["prompt"][None]
  patches = prompted.reshape(B, CIN, HP, PATCH, WP, PATCH)
  patches = patches.transpose(0, 2, 4, 1, 3, 5).reshape(B, NTOK, PDIM)
  patches = patches.astype(jnp.bfloat16)                 # half the input DMA

  # ---- prompt encoder (npoints=None path -> boxes): tiny, built in wrapper ----
  corners = jnp.stack([bbox_tensor[:, 0:2], bbox_tensor[:, 2:4]], axis=1)  # (B, 2, 2)
  corners01 = corners / jnp.float32(IMAGE_SIZE)
  sparse = fourier_pos_encode(corners01, params["pe_gauss"]) + params["corner_embed"][None]
  tokens = jnp.concatenate(
      [jnp.broadcast_to(params["mask_token"][None, None], (B, 1, EMBED)), sparse],
      axis=1).astype(jnp.float32)                        # (B, NPROMPT, EMBED)

  # dense positional encoding of the image-embedding grid
  gy, gx = jnp.meshgrid(jnp.arange(HP), jnp.arange(WP), indexing="ij")
  grid01 = jnp.stack([(gx + 0.5) / WP, (gy + 0.5) / HP], axis=-1).reshape(NTOK, 2)
  image_pe = fourier_pos_encode(grid01.astype(jnp.float32), params["pe_gauss"])

  bf = lambda w: w.astype(jnp.bfloat16)                  # MXU operands in bf16
  row = lambda b: b.reshape(1, -1)                       # 2-D biases for VMEM

  x3d = lambda b: (b, 0, 0)                              # per-batch blocks
  w2d = lambda b: (0, 0)                                 # batch-invariant weights

  out = pl.pallas_call(
      _repsam_fused_kernel,
      out_shape=jax.ShapeDtypeStruct((B, 1, NTOK), jnp.float32),
      grid=(B,),
      in_specs=[
          pl.BlockSpec((1, NTOK, PDIM), x3d),            # patches
          pl.BlockSpec((1, NPROMPT, EMBED), x3d),        # prompt tokens
          pl.BlockSpec((PDIM, EMBED), w2d),              # w_pe
          pl.BlockSpec((1, EMBED), w2d),                 # b_pe
          pl.BlockSpec((NTOK, EMBED), w2d),              # pos_emb
          pl.BlockSpec((4, EMBED), w2d),                 # ln params
          pl.BlockSpec((EMBED, 3 * EMBED), w2d),         # w_qkv (fused)
          pl.BlockSpec((1, 3 * EMBED), w2d),             # b_qkv
          pl.BlockSpec((EMBED, EMBED), w2d),             # wo
          pl.BlockSpec((1, EMBED), w2d),                 # bo
          pl.BlockSpec((EMBED, 4 * EMBED), w2d),         # w1
          pl.BlockSpec((1, 4 * EMBED), w2d),             # b1
          pl.BlockSpec((4 * EMBED, EMBED), w2d),         # w2
          pl.BlockSpec((1, EMBED), w2d),                 # b2
          pl.BlockSpec((EMBED, EMBED), w2d),             # wq2
          pl.BlockSpec((1, EMBED), w2d),                 # bq2
          pl.BlockSpec((EMBED, EMBED), w2d),             # wk2
          pl.BlockSpec((1, EMBED), w2d),                 # bk2
          pl.BlockSpec((EMBED, EMBED), w2d),             # wv2
          pl.BlockSpec((1, EMBED), w2d),                 # bv2
          pl.BlockSpec((EMBED, EMBED), w2d),             # wh
          pl.BlockSpec((1, EMBED), w2d),                 # bh
          pl.BlockSpec((1, EMBED), w2d),                 # no_mask
          pl.BlockSpec((NTOK, EMBED), w2d),              # image_pe
      ],
      out_specs=pl.BlockSpec((1, 1, NTOK), x3d),
      compiler_params=pltpu.CompilerParams(
          dimension_semantics=("parallel",)),            # 2 batch elems -> 2 TCs on v7x
  )(
      patches, tokens,
      bf(params["w_pe"]), row(params["b_pe"]), params["pos_emb"], params["ln"],
      bf(params["w_qkv"]), row(params["b_qkv"]), bf(params["wo"]), row(params["bo"]),
      bf(params["w1"]), row(params["b1"]), bf(params["w2"]), row(params["b2"]),
      bf(params["wq2"]), row(params["bq2"]), bf(params["wk2"]), row(params["bk2"]),
      bf(params["wv2"]), row(params["bv2"]), bf(params["wh"]), row(params["bh"]),
      row(params["no_mask"]), image_pe,
  )
  return out.reshape(B, 1, HP, WP)                       # multimask_output=False


# ==================================== main ===================================

if __name__ == "__main__":
  key = jax.random.PRNGKey(0)
  kx, _ = jax.random.split(key)
  x = jax.random.normal(kx, (BATCH, CIN, IMAGE_SIZE, IMAGE_SIZE), jnp.float32)
  bbox_tensor = jnp.array([[4.0, 4.0, 20.0, 24.0],
                           [6.0, 2.0, 28.0, 30.0]], dtype=jnp.float32)
  params = init_params(jax.random.PRNGKey(42))

  masks = repsam_forward(params, x, bbox_tensor)
  masks = jax.block_until_ready(masks)
  assert masks.shape == (BATCH, 1, HP, WP) and masks.dtype == jnp.float32
  assert bool(jnp.all(jnp.isfinite(masks)))
  print("KERNEL_OK")
</pallas_src>

<mosaic_0001>
module attributes {stable_mosaic.version = 11 : i64} {
  func.func @_repsam_fused_kernel(%arg0: i32, %arg1: memref<1x16x192xbf16, #tpu.memory_space<vmem>>, %arg2: memref<1x3x32xf32, #tpu.memory_space<vmem>>, %arg3: memref<192x32xbf16, #tpu.memory_space<vmem>>, %arg4: memref<1x32xf32, #tpu.memory_space<vmem>>, %arg5: memref<16x32xf32, #tpu.memory_space<vmem>>, %arg6: memref<4x32xf32, #tpu.memory_space<vmem>>, %arg7: memref<32x96xbf16, #tpu.memory_space<vmem>>, %arg8: memref<1x96xf32, #tpu.memory_space<vmem>>, %arg9: memref<32x32xbf16, #tpu.memory_space<vmem>>, %arg10: memref<1x32xf32, #tpu.memory_space<vmem>>, %arg11: memref<32x128xbf16, #tpu.memory_space<vmem>>, %arg12: memref<1x128xf32, #tpu.memory_space<vmem>>, %arg13: memref<128x32xbf16, #tpu.memory_space<vmem>>, %arg14: memref<1x32xf32, #tpu.memory_space<vmem>>, %arg15: memref<32x32xbf16, #tpu.memory_space<vmem>>, %arg16: memref<1x32xf32, #tpu.memory_space<vmem>>, %arg17: memref<32x32xbf16, #tpu.memory_space<vmem>>, %arg18: memref<1x32xf32, #tpu.memory_space<vmem>>, %arg19: memref<32x32xbf16, #tpu.memory_space<vmem>>, %arg20: memref<1x32xf32, #tpu.memory_space<vmem>>, %arg21: memref<32x32xbf16, #tpu.memory_space<vmem>>, %arg22: memref<1x32xf32, #tpu.memory_space<vmem>>, %arg23: memref<1x32xf32, #tpu.memory_space<vmem>>, %arg24: memref<16x32xf32, #tpu.memory_space<vmem>>, %arg25: memref<1x1x16xf32, #tpu.memory_space<vmem>>) attributes {dimension_semantics = [#tpu.dimension_semantics<parallel>], iteration_bounds = array<i64: 2>, scalar_prefetch = 0 : i64, scratch_operands = 0 : i64, tpu.core_type = #tpu.core_type<tc>, window_params = [{transform_indices = @transform_0, window_bounds = array<i64: 1, 16, 192>}, {transform_indices = @transform_1, window_bounds = array<i64: 1, 3, 32>}, {pipeline_mode = #tpu.pipeline_mode<synchronous>, transform_indices = @transform_2, window_bounds = array<i64: 192, 32>}, {pipeline_mode = #tpu.pipeline_mode<synchronous>, transform_indices = @transform_3, window_bounds = array<i64: 1, 32>}, {pipeline_mode = #tpu.pipeline_mode<synchronous>, transform_indices = @transform_4, window_bounds = array<i64: 16, 32>}, {pipeline_mode = #tpu.pipeline_mode<synchronous>, transform_indices = @transform_5, window_bounds = array<i64: 4, 32>}, {pipeline_mode = #tpu.pipeline_mode<synchronous>, transform_indices = @transform_6, window_bounds = array<i64: 32, 96>}, {pipeline_mode = #tpu.pipeline_mode<synchronous>, transform_indices = @transform_7, window_bounds = array<i64: 1, 96>}, {pipeline_mode = #tpu.pipeline_mode<synchronous>, transform_indices = @transform_8, window_bounds = array<i64: 32, 32>}, {pipeline_mode = #tpu.pipeline_mode<synchronous>, transform_indices = @transform_9, window_bounds = array<i64: 1, 32>}, {pipeline_mode = #tpu.pipeline_mode<synchronous>, transform_indices = @transform_10, window_bounds = array<i64: 32, 128>}, {pipeline_mode = #tpu.pipeline_mode<synchronous>, transform_indices = @transform_11, window_bounds = array<i64: 1, 128>}, {pipeline_mode = #tpu.pipeline_mode<synchronous>, transform_indices = @transform_12, window_bounds = array<i64: 128, 32>}, {pipeline_mode = #tpu.pipeline_mode<synchronous>, transform_indices = @transform_13, window_bounds = array<i64: 1, 32>}, {pipeline_mode = #tpu.pipeline_mode<synchronous>, transform_indices = @transform_14, window_bounds = array<i64: 32, 32>}, {pipeline_mode = #tpu.pipeline_mode<synchronous>, transform_indices = @transform_15, window_bounds = array<i64: 1, 32>}, {pipeline_mode = #tpu.pipeline_mode<synchronous>, transform_indices = @transform_16, window_bounds = array<i64: 32, 32>}, {pipeline_mode = #tpu.pipeline_mode<synchronous>, transform_indices = @transform_17, window_bounds = array<i64: 1, 32>}, {pipeline_mode = #tpu.pipeline_mode<synchronous>, transform_indices = @transform_18, window_bounds = array<i64: 32, 32>}, {pipeline_mode = #tpu.pipeline_mode<synchronous>, transform_indices = @transform_19, window_bounds = array<i64: 1, 32>}, {pipeline_mode = #tpu.pipeline_mode<synchronous>, transform_indices = @transform_20, window_bounds = array<i64: 32, 32>}, {pipeline_mode = #tpu.pipeline_mode<synchronous>, transform_indices = @transform_21, window_bounds = array<i64: 1, 32>}, {pipeline_mode = #tpu.pipeline_mode<synchronous>, transform_indices = @transform_22, window_bounds = array<i64: 1, 32>}, {pipeline_mode = #tpu.pipeline_mode<synchronous>, transform_indices = @transform_23, window_bounds = array<i64: 16, 32>}, {transform_indices = @transform_24, window_bounds = array<i64: 1, 1, 16>}]} {
    %cst = arith.constant 3.200000e+01 : f32
    %0 = math.sqrt %cst : f32
    %cst_0 = arith.constant 1.000000e+00 : f32
    %1 = arith.divf %cst_0, %0 : f32
    %c0 = arith.constant 0 : index
    %c0_1 = arith.constant 0 : index
    %2 = vector.load %arg6[%c0, %c0_1] : memref<4x32xf32, #tpu.memory_space<vmem>>, vector<4x32xf32>
    %c0_2 = arith.constant 0 : index
    %c0_3 = arith.constant 0 : index
    %c0_4 = arith.constant 0 : index
    %3 = vector.load %arg1[%c0_2, %c0_3, %c0_4] : memref<1x16x192xbf16, #tpu.memory_space<vmem>>, vector<1x16x192xbf16>
    %4 = vector.shape_cast %3 : vector<1x16x192xbf16> to vector<16x192xbf16>
    %c0_5 = arith.constant 0 : index
    %c0_6 = arith.constant 0 : index
    %5 = vector.load %arg3[%c0_5, %c0_6] : memref<192x32xbf16, #tpu.memory_space<vmem>>, vector<192x32xbf16>
    %cst_7 = arith.constant dense<0.000000e+00> : vector<16x32xf32>
    %6 = tpu.matmul %4, %5, %cst_7 {dimension_numbers = #tpu.dot_dimension_numbers<[1], [0], [0], [1], [0, 0, 1, 1], [], []>} : vector<16x192xbf16>, vector<192x32xbf16>, vector<16x32xf32> -> vector<16x32xf32>
    %c0_8 = arith.constant 0 : index
    %c0_9 = arith.constant 0 : index
    %7 = vector.load %arg4[%c0_8, %c0_9] : memref<1x32xf32, #tpu.memory_space<vmem>>, vector<1x32xf32>
    %8 = vector.broadcast %7 : vector<1x32xf32> to vector<16x32xf32>
    %9 = arith.addf %6, %8 : vector<16x32xf32>
    %c0_10 = arith.constant 0 : index
    %c0_11 = arith.constant 0 : index
    %10 = vector.load %arg5[%c0_10, %c0_11] : memref<16x32xf32, #tpu.memory_space<vmem>>, vector<16x32xf32>
    %11 = arith.addf %9, %10 : vector<16x32xf32>
    %12 = vector.extract_strided_slice %2 {offsets = [0, 0], sizes = [1, 32], strides = [1, 1]} : vector<4x32xf32> to vector<1x32xf32>
    %13 = vector.extract_strided_slice %2 {offsets = [1, 0], sizes = [1, 32], strides = [1, 1]} : vector<4x32xf32> to vector<1x32xf32>
    %cst_12 = arith.constant dense<0.000000e+00> : vector<16xf32>
    %14 = vector.multi_reduction <add>, %11, %cst_12 [1] : vector<16x32xf32> to vector<16xf32>
    %15 = vector.shape_cast %14 : vector<16xf32> to vector<16x1xf32>
    %cst_13 = arith.constant 3.200000e+01 : f32
    %16 = vector.broadcast %cst_13 : f32 to vector<16x1xf32>
    %17 = arith.divf %15, %16 : vector<16x1xf32>
    %18 = vector.broadcast %17 : vector<16x1xf32> to vector<16x32xf32>
    %19 = arith.subf %11, %18 : vector<16x32xf32>
    %20 = arith.mulf %19, %19 : vector<16x32xf32>
    %cst_14 = arith.constant dense<0.000000e+00> : vector<16xf32>
    %21 = vector.multi_reduction <add>, %20, %cst_14 [1] : vector<16x32xf32> to vector<16xf32>
    %22 = vector.shape_cast %21 : vector<16xf32> to vector<16x1xf32>
    %cst_15 = arith.constant 3.200000e+01 : f32
    %23 = vector.broadcast %cst_15 : f32 to vector<16x1xf32>
    %24 = arith.divf %22, %23 : vector<16x1xf32>
    %25 = vector.broadcast %17 : vector<16x1xf32> to vector<16x32xf32>
    %26 = arith.subf %11, %25 : vector<16x32xf32>
    %cst_16 = arith.constant 9.99999997E-7 : f32
    %27 = vector.broadcast %cst_16 : f32 to vector<16x1xf32>
    %28 = arith.addf %24, %27 : vector<16x1xf32>
    %29 = math.rsqrt %28 : vector<16x1xf32>
    %30 = vector.broadcast %29 : vector<16x1xf32> to vector<16x32xf32>
    %31 = arith.mulf %26, %30 : vector<16x32xf32>
    %32 = vector.broadcast %12 : vector<1x32xf32> to vector<16x32xf32>
    %33 = arith.mulf %31, %32 : vector<16x32xf32>
    %34 = vector.broadcast %13 : vector<1x32xf32> to vector<16x32xf32>
    %35 = arith.addf %33, %34 : vector<16x32xf32>
    %c0_17 = arith.constant 0 : index
    %c0_18 = arith.constant 0 : index
    %36 = vector.load %arg7[%c0_17, %c0_18] : memref<32x96xbf16, #tpu.memory_space<vmem>>, vector<32x96xbf16>
    %37 = arith.truncf %35 : vector<16x32xf32> to vector<16x32xbf16>
    %cst_19 = arith.constant dense<0.000000e+00> : vector<16x96xf32>
    %38 = tpu.matmul %37, %36, %cst_19 {dimension_numbers = #tpu.dot_dimension_numbers<[1], [0], [0], [1], [0, 0, 1, 1], [], []>} : vector<16x32xbf16>, vector<32x96xbf16>, vector<16x96xf32> -> vector<16x96xf32>
    %c0_20 = arith.constant 0 : index
    %c0_21 = arith.constant 0 : index
    %39 = vector.load %arg8[%c0_20, %c0_21] : memref<1x96xf32, #tpu.memory_space<vmem>>, vector<1x96xf32>
    %40 = vector.broadcast %39 : vector<1x96xf32> to vector<16x96xf32>
    %41 = arith.addf %38, %40 : vector<16x96xf32>
    %42 = vector.extract_strided_slice %41 {offsets = [0, 0], sizes = [16, 32], strides = [1, 1]} : vector<16x96xf32> to vector<16x32xf32>
    %43 = vector.extract_strided_slice %41 {offsets = [0, 32], sizes = [16, 32], strides = [1, 1]} : vector<16x96xf32> to vector<16x32xf32>
    %44 = vector.extract_strided_slice %41 {offsets = [0, 64], sizes = [16, 32], strides = [1, 1]} : vector<16x96xf32> to vector<16x32xf32>
    %45 = arith.truncf %42 : vector<16x32xf32> to vector<16x32xbf16>
    %46 = arith.truncf %43 : vector<16x32xf32> to vector<16x32xbf16>
    %cst_22 = arith.constant dense<0.000000e+00> : vector<16x16xf32>
    %47 = tpu.matmul %45, %46, %cst_22 {dimension_numbers = #tpu.dot_dimension_numbers<[1], [1], [0], [0], [0, 0, 1, 0], [], []>} : vector<16x32xbf16>, vector<16x32xbf16>, vector<16x16xf32> -> vector<16x16xf32>
    %48 = vector.broadcast %1 : f32 to vector<16x16xf32>
    %49 = arith.mulf %47, %48 : vector<16x16xf32>
    %cst_23 = arith.constant dense<0xFF800000> : vector<16xf32>
    %50 = vector.multi_reduction <maximumf>, %49, %cst_23 [1] : vector<16x16xf32> to vector<16xf32>
    %51 = vector.shape_cast %50 : vector<16xf32> to vector<16x1xf32>
    %52 = vector.broadcast %51 : vector<16x1xf32> to vector<16x16xf32>
    %53 = arith.subf %49, %52 : vector<16x16xf32>
    %54 = math.exp %53 : vector<16x16xf32>
    %cst_24 = arith.constant dense<0.000000e+00> : vector<16xf32>
    %55 = vector.multi_reduction <add>, %54, %cst_24 [1] : vector<16x16xf32> to vector<16xf32>
    %56 = vector.shape_cast %55 : vector<16xf32> to vector<16x1xf32>
    %57 = tpu.reciprocal %56 {approx = true} : vector<16x1xf32> -> vector<16x1xf32>
    %58 = vector.broadcast %57 : vector<16x1xf32> to vector<16x16xf32>
    %59 = arith.mulf %54, %58 : vector<16x16xf32>
    %60 = arith.truncf %59 : vector<16x16xf32> to vector<16x16xbf16>
    %61 = arith.truncf %44 : vector<16x32xf32> to vector<16x32xbf16>
    %cst_25 = arith.constant dense<0.000000e+00> : vector<16x32xf32>
    %62 = tpu.matmul %60, %61, %cst_25 {dimension_numbers = #tpu.dot_dimension_numbers<[1], [0], [0], [1], [0, 0, 1, 1], [], []>} : vector<16x16xbf16>, vector<16x32xbf16>, vector<16x32xf32> -> vector<16x32xf32>
    %c0_26 = arith.constant 0 : index
    %c0_27 = arith.constant 0 : index
    %63 = vector.load %arg9[%c0_26, %c0_27] : memref<32x32xbf16, #tpu.memory_space<vmem>>, vector<32x32xbf16>
    %64 = arith.truncf %62 : vector<16x32xf32> to vector<16x32xbf16>
    %cst_28 = arith.constant dense<0.000000e+00> : vector<16x32xf32>
    %65 = tpu.matmul %64, %63, %cst_28 {dimension_numbers = #tpu.dot_dimension_numbers<[1], [0], [0], [1], [0, 0, 1, 1], [], []>} : vector<16x32xbf16>, vector<32x32xbf16>, vector<16x32xf32> -> vector<16x32xf32>
    %c0_29 = arith.constant 0 : index
    %c0_30 = arith.constant 0 : index
    %66 = vector.load %arg10[%c0_29, %c0_30] : memref<1x32xf32, #tpu.memory_space<vmem>>, vector<1x32xf32>
    %67 = vector.broadcast %66 : vector<1x32xf32> to vector<16x32xf32>
    %68 = arith.addf %65, %67 : vector<16x32xf32>
    %69 = arith.addf %11, %68 : vector<16x32xf32>
    %70 = vector.extract_strided_slice %2 {offsets = [2, 0], sizes = [1, 32], strides = [1, 1]} : vector<4x32xf32> to vector<1x32xf32>
    %71 = vector.extract_strided_slice %2 {offsets = [3, 0], sizes = [1, 32], strides = [1, 1]} : vector<4x32xf32> to vector<1x32xf32>
    %cst_31 = arith.constant dense<0.000000e+00> : vector<16xf32>
    %72 = vector.multi_reduction <add>, %69, %cst_31 [1] : vector<16x32xf32> to vector<16xf32>
    %73 = vector.shape_cast %72 : vector<16xf32> to vector<16x1xf32>
    %cst_32 = arith.constant 3.200000e+01 : f32
    %74 = vector.broadcast %cst_32 : f32 to vector<16x1xf32>
    %75 = arith.divf %73, %74 : vector<16x1xf32>
    %76 = vector.broadcast %75 : vector<16x1xf32> to vector<16x32xf32>
    %77 = arith.subf %69, %76 : vector<16x32xf32>
    %78 = arith.mulf %77, %77 : vector<16x32xf32>
    %cst_33 = arith.constant dense<0.000000e+00> : vector<16xf32>
    %79 = vector.multi_reduction <add>, %78, %cst_33 [1] : vector<16x32xf32> to vector<16xf32>
    %80 = vector.shape_cast %79 : vector<16xf32> to vector<16x1xf32>
    %cst_34 = arith.constant 3.200000e+01 : f32
    %81 = vector.broadcast %cst_34 : f32 to vector<16x1xf32>
    %82 = arith.divf %80, %81 : vector<16x1xf32>
    %83 = vector.broadcast %75 : vector<16x1xf32> to vector<16x32xf32>
    %84 = arith.subf %69, %83 : vector<16x32xf32>
    %cst_35 = arith.constant 9.99999997E-7 : f32
    %85 = vector.broadcast %cst_35 : f32 to vector<16x1xf32>
    %86 = arith.addf %82, %85 : vector<16x1xf32>
    %87 = math.rsqrt %86 : vector<16x1xf32>
    %88 = vector.broadcast %87 : vector<16x1xf32> to vector<16x32xf32>
    %89 = arith.mulf %84, %88 : vector<16x32xf32>
    %90 = vector.broadcast %70 : vector<1x32xf32> to vector<16x32xf32>
    %91 = arith.mulf %89, %90 : vector<16x32xf32>
    %92 = vector.broadcast %71 : vector<1x32xf32> to vector<16x32xf32>
    %93 = arith.addf %91, %92 : vector<16x32xf32>
    %c0_36 = arith.constant 0 : index
    %c0_37 = arith.constant 0 : index
    %94 = vector.load %arg11[%c0_36, %c0_37] : memref<32x128xbf16, #tpu.memory_space<vmem>>, vector<32x128xbf16>
    %95 = arith.truncf %93 : vector<16x32xf32> to vector<16x32xbf16>
    %cst_38 = arith.constant dense<0.000000e+00> : vector<16x128xf32>
    %96 = tpu.matmul %95, %94, %cst_38 {dimension_numbers = #tpu.dot_dimension_numbers<[1], [0], [0], [1], [0, 0, 1, 1], [], []>} : vector<16x32xbf16>, vector<32x128xbf16>, vector<16x128xf32> -> vector<16x128xf32>
    %c0_39 = arith.constant 0 : index
    %c0_40 = arith.constant 0 : index
    %97 = vector.load %arg12[%c0_39, %c0_40] : memref<1x128xf32, #tpu.memory_space<vmem>>, vector<1x128xf32>
    %98 = vector.broadcast %97 : vector<1x128xf32> to vector<16x128xf32>
    %99 = arith.addf %96, %98 : vector<16x128xf32>
    %100 = arith.mulf %99, %99 : vector<16x128xf32>
    %101 = arith.mulf %99, %100 : vector<16x128xf32>
    %cst_41 = arith.constant 4.471500e-02 : f32
    %102 = vector.broadcast %cst_41 : f32 to vector<16x128xf32>
    %103 = arith.mulf %102, %101 : vector<16x128xf32>
    %104 = arith.addf %99, %103 : vector<16x128xf32>
    %cst_42 = arith.constant 0.797884583 : f32
    %105 = vector.broadcast %cst_42 : f32 to vector<16x128xf32>
    %106 = arith.mulf %105, %104 : vector<16x128xf32>
    %107 = math.tanh %106 : vector<16x128xf32>
    %cst_43 = arith.constant 1.000000e+00 : f32
    %108 = vector.broadcast %cst_43 : f32 to vector<16x128xf32>
    %109 = arith.addf %108, %107 : vector<16x128xf32>
    %cst_44 = arith.constant 5.000000e-01 : f32
    %110 = vector.broadcast %cst_44 : f32 to vector<16x128xf32>
    %111 = arith.mulf %110, %109 : vector<16x128xf32>
    %112 = arith.mulf %99, %111 : vector<16x128xf32>
    %c0_45 = arith.constant 0 : index
    %c0_46 = arith.constant 0 : index
    %113 = vector.load %arg13[%c0_45, %c0_46] : memref<128x32xbf16, #tpu.memory_space<vmem>>, vector<128x32xbf16>
    %114 = arith.truncf %112 : vector<16x128xf32> to vector<16x128xbf16>
    %cst_47 = arith.constant dense<0.000000e+00> : vector<16x32xf32>
    %115 = tpu.matmul %114, %113, %cst_47 {dimension_numbers = #tpu.dot_dimension_numbers<[1], [0], [0], [1], [0, 0, 1, 1], [], []>} : vector<16x128xbf16>, vector<128x32xbf16>, vector<16x32xf32> -> vector<16x32xf32>
    %116 = arith.addf %69, %115 : vector<16x32xf32>
    %c0_48 = arith.constant 0 : index
    %c0_49 = arith.constant 0 : index
    %117 = vector.load %arg14[%c0_48, %c0_49] : memref<1x32xf32, #tpu.memory_space<vmem>>, vector<1x32xf32>
    %118 = vector.broadcast %117 : vector<1x32xf32> to vector<16x32xf32>
    %119 = arith.addf %116, %118 : vector<16x32xf32>
    %c0_50 = arith.constant 0 : index
    %c0_51 = arith.constant 0 : index
    %120 = vector.load %arg23[%c0_50, %c0_51] : memref<1x32xf32, #tpu.memory_space<vmem>>, vector<1x32xf32>
    %121 = vector.broadcast %120 : vector<1x32xf32> to vector<16x32xf32>
    %122 = arith.addf %119, %121 : vector<16x32xf32>
    %c0_52 = arith.constant 0 : index
    %c0_53 = arith.constant 0 : index
    %c0_54 = arith.constant 0 : index
    %123 = vector.load %arg2[%c0_52, %c0_53, %c0_54] : memref<1x3x32xf32, #tpu.memory_space<vmem>>, vector<1x3x32xf32>
    %124 = vector.shape_cast %123 : vector<1x3x32xf32> to vector<3x32xf32>
    %c0_55 = arith.constant 0 : index
    %c0_56 = arith.constant 0 : index
    %125 = vector.load %arg15[%c0_55, %c0_56] : memref<32x32xbf16, #tpu.memory_space<vmem>>, vector<32x32xbf16>
    %126 = arith.truncf %124 : vector<3x32xf32> to vector<3x32xbf16>
    %cst_57 = arith.constant dense<0.000000e+00> : vector<3x32xf32>
    %127 = tpu.matmul %126, %125, %cst_57 {dimension_numbers = #tpu.dot_dimension_numbers<[1], [0], [0], [1], [0, 0, 1, 1], [], []>} : vector<3x32xbf16>, vector<32x32xbf16>, vector<3x32xf32> -> vector<3x32xf32>
    %c0_58 = arith.constant 0 : index
    %c0_59 = arith.constant 0 : index
    %128 = vector.load %arg16[%c0_58, %c0_59] : memref<1x32xf32, #tpu.memory_space<vmem>>, vector<1x32xf32>
    %129 = vector.broadcast %128 : vector<1x32xf32> to vector<3x32xf32>
    %130 = arith.addf %127, %129 : vector<3x32xf32>
    %c0_60 = arith.constant 0 : index
    %c0_61 = arith.constant 0 : index
    %131 = vector.load %arg24[%c0_60, %c0_61] : memref<16x32xf32, #tpu.memory_space<vmem>>, vector<16x32xf32>
    %132 = arith.addf %122, %131 : vector<16x32xf32>
    %c0_62 = arith.constant 0 : index
    %c0_63 = arith.constant 0 : index
    %133 = vector.load %arg17[%c0_62, %c0_63] : memref<32x32xbf16, #tpu.memory_space<vmem>>, vector<32x32xbf16>
    %134 = arith.truncf %132 : vector<16x32xf32> to vector<16x32xbf16>
    %cst_64 = arith.constant dense<0.000000e+00> : vector<16x32xf32>
    %135 = tpu.matmul %134, %133, %cst_64 {dimension_numbers = #tpu.dot_dimension_numbers<[1], [0], [0], [1], [0, 0, 1, 1], [], []>} : vector<16x32xbf16>, vector<32x32xbf16>, vector<16x32xf32> -> vector<16x32xf32>
    %c0_65 = arith.constant 0 : index
    %c0_66 = arith.constant 0 : index
    %136 = vector.load %arg18[%c0_65, %c0_66] : memref<1x32xf32, #tpu.memory_space<vmem>>, vector<1x32xf32>
    %137 = vector.broadcast %136 : vector<1x32xf32> to vector<16x32xf32>
    %138 = arith.addf %135, %137 : vector<16x32xf32>
    %c0_67 = arith.constant 0 : index
    %c0_68 = arith.constant 0 : index
    %139 = vector.load %arg19[%c0_67, %c0_68] : memref<32x32xbf16, #tpu.memory_space<vmem>>, vector<32x32xbf16>
    %140 = arith.truncf %122 : vector<16x32xf32> to vector<16x32xbf16>
    %cst_69 = arith.constant dense<0.000000e+00> : vector<16x32xf32>
    %141 = tpu.matmul %140, %139, %cst_69 {dimension_numbers = #tpu.dot_dimension_numbers<[1], [0], [0], [1], [0, 0, 1, 1], [], []>} : vector<16x32xbf16>, vector<32x32xbf16>, vector<16x32xf32> -> vector<16x32xf32>
    %c0_70 = arith.constant 0 : index
    %c0_71 = arith.constant 0 : index
    %142 = vector.load %arg20[%c0_70, %c0_71] : memref<1x32xf32, #tpu.memory_space<vmem>>, vector<1x32xf32>
    %143 = vector.broadcast %142 : vector<1x32xf32> to vector<16x32xf32>
    %144 = arith.addf %141, %143 : vector<16x32xf32>
    %145 = arith.truncf %130 : vector<3x32xf32> to vector<3x32xbf16>
    %146 = arith.truncf %138 : vector<16x32xf32> to vector<16x32xbf16>
    %cst_72 = arith.constant dense<0.000000e+00> : vector<3x16xf32>
    %147 = tpu.matmul %145, %146, %cst_72 {dimension_numbers = #tpu.dot_dimension_numbers<[1], [1], [0], [0], [0, 0, 1, 0], [], []>} : vector<3x32xbf16>, vector<16x32xbf16>, vector<3x16xf32> -> vector<3x16xf32>
    %148 = vector.broadcast %1 : f32 to vector<3x16xf32>
    %149 = arith.mulf %147, %148 : vector<3x16xf32>
    %cst_73 = arith.constant dense<0xFF800000> : vector<3xf32>
    %150 = vector.multi_reduction <maximumf>, %149, %cst_73 [1] : vector<3x16xf32> to vector<3xf32>
    %151 = vector.shape_cast %150 : vector<3xf32> to vector<3x1xf32>
    %152 = vector.broadcast %151 : vector<3x1xf32> to vector<3x16xf32>
    %153 = arith.subf %149, %152 : vector<3x16xf32>
    %154 = math.exp %153 : vector<3x16xf32>
    %cst_74 = arith.constant dense<0.000000e+00> : vector<3xf32>
    %155 = vector.multi_reduction <add>, %154, %cst_74 [1] : vector<3x16xf32> to vector<3xf32>
    %156 = vector.shape_cast %155 : vector<3xf32> to vector<3x1xf32>
    %157 = tpu.reciprocal %156 {approx = true} : vector<3x1xf32> -> vector<3x1xf32>
    %158 = vector.broadcast %157 : vector<3x1xf32> to vector<3x16xf32>
    %159 = arith.mulf %154, %158 : vector<3x16xf32>
    %160 = arith.truncf %159 : vector<3x16xf32> to vector<3x16xbf16>
    %161 = arith.truncf %144 : vector<16x32xf32> to vector<16x32xbf16>
    %cst_75 = arith.constant dense<0.000000e+00> : vector<3x32xf32>
    %162 = tpu.matmul %160, %161, %cst_75 {dimension_numbers = #tpu.dot_dimension_numbers<[1], [0], [0], [1], [0, 0, 1, 1], [], []>} : vector<3x16xbf16>, vector<16x32xbf16>, vector<3x32xf32> -> vector<3x32xf32>
    %163 = vector.extract_strided_slice %162 {offsets = [0, 0], sizes = [1, 32], strides = [1, 1]} : vector<3x32xf32> to vector<1x32xf32>
    %c0_76 = arith.constant 0 : index
    %c0_77 = arith.constant 0 : index
    %164 = vector.load %arg21[%c0_76, %c0_77] : memref<32x32xbf16, #tpu.memory_space<vmem>>, vector<32x32xbf16>
    %165 = arith.truncf %163 : vector<1x32xf32> to vector<1x32xbf16>
    %cst_78 = arith.constant dense<0.000000e+00> : vector<1x32xf32>
    %166 = tpu.matmul %165, %164, %cst_78 {dimension_numbers = #tpu.dot_dimension_numbers<[1], [0], [0], [1], [0, 0, 1, 1], [], []>} : vector<1x32xbf16>, vector<32x32xbf16>, vector<1x32xf32> -> vector<1x32xf32>
    %c0_79 = arith.constant 0 : index
    %c0_80 = arith.constant 0 : index
    %167 = vector.load %arg22[%c0_79, %c0_80] : memref<1x32xf32, #tpu.memory_space<vmem>>, vector<1x32xf32>
    %168 = arith.addf %166, %167 : vector<1x32xf32>
    %169 = arith.truncf %168 : vector<1x32xf32> to vector<1x32xbf16>
    %170 = arith.truncf %122 : vector<16x32xf32> to vector<16x32xbf16>
    %cst_81 = arith.constant dense<0.000000e+00> : vector<1x16xf32>
    %171 = tpu.matmul %169, %170, %cst_81 {dimension_numbers = #tpu.dot_dimension_numbers<[1], [1], [0], [0], [0, 0, 1, 0], [], []>} : vector<1x32xbf16>, vector<16x32xbf16>, vector<1x16xf32> -> vector<1x16xf32>
    %172 = vector.shape_cast %171 : vector<1x16xf32> to vector<1x1x16xf32>
    %c0_82 = arith.constant 0 : index
    %c0_83 = arith.constant 0 : index
    %c0_84 = arith.constant 0 : index
    %173 = vector.load %arg25[%c0_82, %c0_83, %c0_84] : memref<1x1x16xf32, #tpu.memory_space<vmem>>, vector<1x1x16xf32>
    tpu.vector_store %arg25[%c0_82, %c0_83, %c0_84], %172 {strides = array<i32>} : memref<1x1x16xf32, #tpu.memory_space<vmem>>, vector<1x1x16xf32>,
    return
  }
  func.func @transform_0(%arg0: i32) -> (i32, i32, i32) {
    %c0_i32 = arith.constant 0 : i32
    %c0_i32_0 = arith.constant 0 : i32
    %c0_i32_1 = arith.constant 0 : i32
    return %arg0, %c0_i32, %c0_i32_0 : i32, i32, i32
  }
  func.func @transform_1(%arg0: i32) -> (i32, i32, i32) {
    %c0_i32 = arith.constant 0 : i32
    %c0_i32_0 = arith.constant 0 : i32
    %c0_i32_1 = arith.constant 0 : i32
    return %arg0, %c0_i32, %c0_i32_0 : i32, i32, i32
  }
  func.func @transform_2(%arg0: i32) -> (i32, i32) {
    %c0_i32 = arith.constant 0 : i32
    %c0_i32_0 = arith.constant 0 : i32
    %c0_i32_1 = arith.constant 0 : i32
    return %c0_i32, %c0_i32_0 : i32, i32
  }
  func.func @transform_3(%arg0: i32) -> (i32, i32) {
    %c0_i32 = arith.constant 0 : i32
    %c0_i32_0 = arith.constant 0 : i32
    %c0_i32_1 = arith.constant 0 : i32
    return %c0_i32, %c0_i32_0 : i32, i32
  }
  func.func @transform_4(%arg0: i32) -> (i32, i32) {
    %c0_i32 = arith.constant 0 : i32
    %c0_i32_0 = arith.constant 0 : i32
    %c0_i32_1 = arith.constant 0 : i32
    return %c0_i32, %c0_i32_0 : i32, i32
  }
  func.func @transform_5(%arg0: i32) -> (i32, i32) {
    %c0_i32 = arith.constant 0 : i32
    %c0_i32_0 = arith.constant 0 : i32
    %c0_i32_1 = arith.constant 0 : i32
    return %c0_i32, %c0_i32_0 : i32, i32
  }
  func.func @transform_6(%arg0: i32) -> (i32, i32) {
    %c0_i32 = arith.constant 0 : i32
    %c0_i32_0 = arith.constant 0 : i32
    %c0_i32_1 = arith.constant 0 : i32
    return %c0_i32, %c0_i32_0 : i32, i32
  }
  func.func @transform_7(%arg0: i32) -> (i32, i32) {
    %c0_i32 = arith.constant 0 : i32
    %c0_i32_0 = arith.constant 0 : i32
    %c0_i32_1 = arith.constant 0 : i32
    return %c0_i32, %c0_i32_0 : i32, i32
  }
  func.func @transform_8(%arg0: i32) -> (i32, i32) {
    %c0_i32 = arith.constant 0 : i32
    %c0_i32_0 = arith.constant 0 : i32
    %c0_i32_1 = arith.constant 0 : i32
    return %c0_i32, %c0_i32_0 : i32, i32
  }
  func.func @transform_9(%arg0: i32) -> (i32, i32) {
    %c0_i32 = arith.constant 0 : i32
    %c0_i32_0 = arith.constant 0 : i32
    %c0_i32_1 = arith.constant 0 : i32
    return %c0_i32, %c0_i32_0 : i32, i32
  }
  func.func @transform_10(%arg0: i32) -> (i32, i32) {
    %c0_i32 = arith.constant 0 : i32
    %c0_i32_0 = arith.constant 0 : i32
    %c0_i32_1 = arith.constant 0 : i32
    return %c0_i32, %c0_i32_0 : i32, i32
  }
  func.func @transform_11(%arg0: i32) -> (i32, i32) {
    %c0_i32 = arith.constant 0 : i32
    %c0_i32_0 = arith.constant 0 : i32
    %c0_i32_1 = arith.constant 0 : i32
    return %c0_i32, %c0_i32_0 : i32, i32
  }
  func.func @transform_12(%arg0: i32) -> (i32, i32) {
    %c0_i32 = arith.constant 0 : i32
    %c0_i32_0 = arith.constant 0 : i32
    %c0_i32_1 = arith.constant 0 : i32
    return %c0_i32, %c0_i32_0 : i32, i32
  }
  func.func @transform_13(%arg0: i32) -> (i32, i32) {
    %c0_i32 = arith.constant 0 : i32
    %c0_i32_0 = arith.constant 0 : i32
    %c0_i32_1 = arith.constant 0 : i32
    return %c0_i32, %c0_i32_0 : i32, i32
  }
  func.func @transform_14(%arg0: i32) -> (i32, i32) {
    %c0_i32 = arith.constant 0 : i32
    %c0_i32_0 = arith.constant 0 : i32
    %c0_i32_1 = arith.constant 0 : i32
    return %c0_i32, %c0_i32_0 : i32, i32
  }
  func.func @transform_15(%arg0: i32) -> (i32, i32) {
    %c0_i32 = arith.constant 0 : i32
    %c0_i32_0 = arith.constant 0 : i32
    %c0_i32_1 = arith.constant 0 : i32
    return %c0_i32, %c0_i32_0 : i32, i32
  }
  func.func @transform_16(%arg0: i32) -> (i32, i32) {
    %c0_i32 = arith.constant 0 : i32
    %c0_i32_0 = arith.constant 0 : i32
    %c0_i32_1 = arith.constant 0 : i32
    return %c0_i32, %c0_i32_0 : i32, i32
  }
  func.func @transform_17(%arg0: i32) -> (i32, i32) {
    %c0_i32 = arith.constant 0 : i32
    %c0_i32_0 = arith.constant 0 : i32
    %c0_i32_1 = arith.constant 0 : i32
    return %c0_i32, %c0_i32_0 : i32, i32
  }
  func.func @transform_18(%arg0: i32) -> (i32, i32) {
    %c0_i32 = arith.constant 0 : i32
    %c0_i32_0 = arith.constant 0 : i32
    %c0_i32_1 = arith.constant 0 : i32
    return %c0_i32, %c0_i32_0 : i32, i32
  }
  func.func @transform_19(%arg0: i32) -> (i32, i32) {
    %c0_i32 = arith.constant 0 : i32
    %c0_i32_0 = arith.constant 0 : i32
    %c0_i32_1 = arith.constant 0 : i32
    return %c0_i32, %c0_i32_0 : i32, i32
  }
  func.func @transform_20(%arg0: i32) -> (i32, i32) {
    %c0_i32 = arith.constant 0 : i32
    %c0_i32_0 = arith.constant 0 : i32
    %c0_i32_1 = arith.constant 0 : i32
    return %c0_i32, %c0_i32_0 : i32, i32
  }
  func.func @transform_21(%arg0: i32) -> (i32, i32) {
    %c0_i32 = arith.constant 0 : i32
    %c0_i32_0 = arith.constant 0 : i32
    %c0_i32_1 = arith.constant 0 : i32
    return %c0_i32, %c0_i32_0 : i32, i32
  }
  func.func @transform_22(%arg0: i32) -> (i32, i32) {
    %c0_i32 = arith.constant 0 : i32
    %c0_i32_0 = arith.constant 0 : i32
    %c0_i32_1 = arith.constant 0 : i32
    return %c0_i32, %c0_i32_0 : i32, i32
  }
  func.func @transform_23(%arg0: i32) -> (i32, i32) {
    %c0_i32 = arith.constant 0 : i32
    %c0_i32_0 = arith.constant 0 : i32
    %c0_i32_1 = arith.constant 0 : i32
    return %c0_i32, %c0_i32_0 : i32, i32
  }
  func.func @transform_24(%arg0: i32) -> (i32, i32, i32) {
    %c0_i32 = arith.constant 0 : i32
    %c0_i32_0 = arith.constant 0 : i32
    %c0_i32_1 = arith.constant 0 : i32
    return %arg0, %c0_i32, %c0_i32_0 : i32, i32, i32
  }
}

</mosaic_0001>

<llo_original>
// kernel: repsam_forward.1
$region0: #{repsam_forward.1}
  #allocation0 [shape = 'u32[]', space=smem, size = 0x4, offset = 0x4, fixed_abs, tag = 'smem constant byte address 0x4 - core index']
  #allocation1 [shape = 'u32[144,128]{1,0:T(1,128)}', space=vmem, size = 0x12000, scoped, tag = 'internal scratch']
  %s0 = inlined_call_operand.vmem [shape: bf16[2,16,192], index: 0, kind: input, shape index: {}]
  %s1 = inlined_call_operand.vmem [shape: f32[2,3,32], index: 1, kind: input, shape index: {}]
  %s2 = inlined_call_operand.vmem [shape: bf16[192,32], index: 2, kind: input, shape index: {}]
  %s3 = inlined_call_operand.vmem [shape: f32[1,32], index: 3, kind: input, shape index: {}]
  %s4 = inlined_call_operand.vmem [shape: f32[16,32], index: 4, kind: input, shape index: {}]
  %s5 = inlined_call_operand.vmem [shape: f32[4,32], index: 5, kind: input, shape index: {}]
  %s6 = inlined_call_operand.vmem [shape: bf16[32,96], index: 6, kind: input, shape index: {}]
  %s7 = inlined_call_operand.vmem [shape: f32[1,96], index: 7, kind: input, shape index: {}]
  %s8 = inlined_call_operand.vmem [shape: bf16[32,32], index: 8, kind: input, shape index: {}]
  %s9 = inlined_call_operand.vmem [shape: f32[1,32], index: 9, kind: input, shape index: {}]
  %s10 = inlined_call_operand.vmem [shape: bf16[32,128], index: 10, kind: input, shape index: {}]
  %s11 = inlined_call_operand.vmem [shape: f32[1,128], index: 11, kind: input, shape index: {}]
  %s12 = inlined_call_operand.vmem [shape: bf16[128,32], index: 12, kind: input, shape index: {}]
  %s13 = inlined_call_operand.vmem [shape: f32[1,32], index: 13, kind: input, shape index: {}]
  %s14 = inlined_call_operand.vmem [shape: bf16[32,32], index: 14, kind: input, shape index: {}]
  %s15 = inlined_call_operand.vmem [shape: f32[1,32], index: 15, kind: input, shape index: {}]
  %s16 = inlined_call_operand.vmem [shape: bf16[32,32], index: 16, kind: input, shape index: {}]
  %s17 = inlined_call_operand.vmem [shape: f32[1,32], index: 17, kind: input, shape index: {}]
  %s18 = inlined_call_operand.vmem [shape: bf16[32,32], index: 18, kind: input, shape index: {}]
  %s19 = inlined_call_operand.vmem [shape: f32[1,32], index: 19, kind: input, shape index: {}]
  %s20 = inlined_call_operand.vmem [shape: bf16[32,32], index: 20, kind: input, shape index: {}]
  %s21 = inlined_call_operand.vmem [shape: f32[1,32], index: 21, kind: input, shape index: {}]
  %s22 = inlined_call_operand.vmem [shape: f32[1,32], index: 22, kind: input, shape index: {}]
  %s23 = inlined_call_operand.vmem [shape: f32[16,32], index: 23, kind: input, shape index: {}]
  %s24 = inlined_call_operand.vmem [shape: f32[2,1,16], index: 24, kind: output, shape index: {}]
  %s25 = sld [smem:[#allocation0]]
  $region129: #{repsam_forward.1} parent=0
    _
  %s27 = ssub.s32 1, %s25
  %s28 = scalar_select 0, %s27, %s25
  loop: start=0, step=1, limit=4
  $region2: #{repsam_forward.1} parent=0 // loop_pre_header
    _
  $region3: #{repsam_forward.1} parent=0 // loop_header
    %s30 = sphi 0, %s34
    %p31 = scmp.ge.s32.totalorder %s30, 4
    %s40 = sphi 0, %s42
    %s43 = sphi 0, %s40
    %s44 = sphi 0, %s43
    %s60 = sphi 0, %s44
    %s66 = sphi 0, %s68
    %s69 = sphi 0, %s66
    %s70 = sphi 0, %s69
    %s86 = sphi 0, %s70
    %s90 = sphi 0, %s90
    %s92 = sphi 0, %s90
    %s93 = sphi 0, %s92
    %s107 = sphi 0, %s93
    %s111 = sphi 0, %s111
    %s113 = sphi 0, %s111
    %s114 = sphi 0, %s113
    %s128 = sphi 0, %s114
    %s132 = sphi 0, %s132
    %s134 = sphi 0, %s132
    %s135 = sphi 0, %s134
    %s149 = sphi 0, %s135
    %s153 = sphi 0, %s153
    %s155 = sphi 0, %s153
    %s156 = sphi 0, %s155
    %s170 = sphi 0, %s156
    %s174 = sphi 0, %s174
    %s176 = sphi 0, %s174
    %s177 = sphi 0, %s176
    %s191 = sphi 0, %s177
    %s195 = sphi 0, %s195
    %s197 = sphi 0, %s195
    %s198 = sphi 0, %s197
    %s212 = sphi 0, %s198
    %s216 = sphi 0, %s216
    %s218 = sphi 0, %s216
    %s219 = sphi 0, %s218
    %s233 = sphi 0, %s219
    %s237 = sphi 0, %s237
    %s239 = sphi 0, %s237
    %s240 = sphi 0, %s239
    %s254 = sphi 0, %s240
    %s258 = sphi 0, %s258
    %s260 = sphi 0, %s258
    %s261 = sphi 0, %s260
    %s275 = sphi 0, %s261
    %s279 = sphi 0, %s279
    %s281 = sphi 0, %s279
    %s282 = sphi 0, %s281
    %s296 = sphi 0, %s282
    %s300 = sphi 0, %s300
    %s302 = sphi 0, %s300
    %s303 = sphi 0, %s302
    %s317 = sphi 0, %s303
    %s321 = sphi 0, %s321
    %s323 = sphi 0, %s321
    %s324 = sphi 0, %s323
    %s338 = sphi 0, %s324
    %s342 = sphi 0, %s342
    %s344 = sphi 0, %s342
    %s345 = sphi 0, %s344
    %s359 = sphi 0, %s345
    %s363 = sphi 0, %s363
    %s365 = sphi 0, %s363
    %s366 = sphi 0, %s365
    %s380 = sphi 0, %s366
    %s384 = sphi 0, %s384
    %s386 = sphi 0, %s384
    %s387 = sphi 0, %s386
    %s401 = sphi 0, %s387
    %s405 = sphi 0, %s405
    %s407 = sphi 0, %s405
    %s408 = sphi 0, %s407
    %s422 = sphi 0, %s408
    %s426 = sphi 0, %s426
    %s428 = sphi 0, %s426
    %s429 = sphi 0, %s428
    %s443 = sphi 0, %s429
    %s447 = sphi 0, %s447
    %s449 = sphi 0, %s447
    %s450 = sphi 0, %s449
    %s464 = sphi 0, %s450
    %s468 = sphi 0, %s468
    %s470 = sphi 0, %s468
    %s471 = sphi 0, %s470
    %s485 = sphi 0, %s471
    %s489 = sphi 0, %s489
    %s491 = sphi 0, %s489
    %s492 = sphi 0, %s491
    %s506 = sphi 0, %s492
    %s510 = sphi 0, %s510
    %s512 = sphi 0, %s510
    %s513 = sphi 0, %s512
    %s527 = sphi 0, %s513
    %s531 = sphi 0, %s531
    %s533 = sphi 0, %s531
    %s534 = sphi 0, %s533
    %s548 = sphi 0, %s534
    %s554 = sphi 0, %s556
    %s557 = sphi 0, %s554
    %s558 = sphi 0, %s557
    %s574 = sphi 0, %s558
  $region4: #{repsam_forward.1} parent=0 // loop_header_branch
    %33 = sbr.rel (%p31) target = $region8
  $region5: #{repsam_forward.1} parent=0 // loop_body
    %s35 = ssub.s32 %s30, 1
    %s36 = ssub.s32 %s30, 2
    %s37 = sadd.s32 %s30, 1
    %s38 = ssub.s32 %s30, %s37
    %p39 = scmp.eq.s32.totalorder %s38, 0
    %s41 = sadd.s32 %s40, 1
    %s42 = scalar_select %p39, %s40, %s41
    %p45 = pneg %p39
    %p46 = scmp.eq.s32.totalorder %s30, 1
    %p47 = por %p45, %p46
    %p48 = scmp.ne.s32.totalorder %s40, %s43
    %p49 = scmp.eq.s32.totalorder %s30, 0
    %p50 = por %p48, %p49
    %p51 = scmp.ne.s32.totalorder %s40, %s43
    %p52 = scmp.eq.s32.totalorder %s35, 1
    %p53 = por %p51, %p52
    %p54 = scmp.ne.s32.totalorder %s43, %s44
    %p55 = scmp.eq.s32.totalorder %s35, 0
    %p56 = por %p54, %p55
    %p57 = scmp.ne.s32.totalorder %s43, %s44
    %p58 = scmp.eq.s32.totalorder %s36, 1
    %p59 = por %p57, %p58
    %p61 = scmp.ne.s32.totalorder %s44, %s60
    %p62 = scmp.eq.s32.totalorder %s36, 0
    %p63 = por %p61, %p62
    %s64 = ssub.s32 %s30, %s37
    %p65 = scmp.eq.s32.totalorder %s64, 0
    %s67 = sadd.s32 %s66, 1
    %s68 = scalar_select %p65, %s66, %s67
    %p71 = pneg %p65
    %p72 = scmp.eq.s32.totalorder %s30, 1
    %p73 = por %p71, %p72
    %p74 = scmp.ne.s32.totalorder %s66, %s69
    %p75 = scmp.eq.s32.totalorder %s30, 0
    %p76 = por %p74, %p75
    %p77 = scmp.ne.s32.totalorder %s66, %s69
    %p78 = scmp.eq.s32.totalorder %s35, 1
    %p79 = por %p77, %p78
    %p80 = scmp.ne.s32.totalorder %s69, %s70
    %p81 = scmp.eq.s32.totalorder %s35, 0
    %p82 = por %p80, %p81
    %p83 = scmp.ne.s32.totalorder %s69, %s70
    %p84 = scmp.eq.s32.totalorder %s36, 1
    %p85 = por %p83, %p84
    %p87 = scmp.ne.s32.totalorder %s70, %s86
    %p88 = scmp.eq.s32.totalorder %s36, 0
    %p89 = por %p87, %p88
    %s91 = sadd.s32 %s90, 1
    %p94 = scmp.eq.s32.totalorder %s30, 1
    %p95 = scmp.ne.s32.totalorder %s90, %s92
    %p96 = scmp.eq.s32.totalorder %s30, 0
    %p97 = por %p95, %p96
    %p98 = scmp.ne.s32.totalorder %s90, %s92
    %p99 = scmp.eq.s32.totalorder %s35, 1
    %p100 = por %p98, %p99
    %p101 = scmp.ne.s32.totalorder %s92, %s93
    %p102 = scmp.eq.s32.totalorder %s35, 0
    %p103 = por %p101, %p102
    %p104 = scmp.ne.s32.totalorder %s92, %s93
    %p105 = scmp.eq.s32.totalorder %s36, 1
    %p106 = por %p104, %p105
    %p108 = scmp.ne.s32.totalorder %s93, %s107
    %p109 = scmp.eq.s32.totalorder %s36, 0
    %p110 = por %p108, %p109
    %s112 = sadd.s32 %s111, 1
    %p115 = scmp.eq.s32.totalorder %s30, 1
    %p116 = scmp.ne.s32.totalorder %s111, %s113
    %p117 = scmp.eq.s32.totalorder %s30, 0
    %p118 = por %p116, %p117
    %p119 = scmp.ne.s32.totalorder %s111, %s113
    %p120 = scmp.eq.s32.totalorder %s35, 1
    %p121 = por %p119, %p120
    %p122 = scmp.ne.s32.totalorder %s113, %s114
    %p123 = scmp.eq.s32.totalorder %s35, 0
    %p124 = por %p122, %p123
    %p125 = scmp.ne.s32.totalorder %s113, %s114
    %p126 = scmp.eq.s32.totalorder %s36, 1
    %p127 = por %p125, %p126
    %p129 = scmp.ne.s32.totalorder %s114, %s128
    %p130 = scmp.eq.s32.totalorder %s36, 0
    %p131 = por %p129, %p130
    %s133 = sadd.s32 %s132, 1
    %p136 = scmp.eq.s32.totalorder %s30, 1
    %p137 = scmp.ne.s32.totalorder %s132, %s134
    %p138 = scmp.eq.s32.totalorder %s30, 0
    %p139 = por %p137, %p138
    %p140 = scmp.ne.s32.totalorder %s132, %s134
    %p141 = scmp.eq.s32.totalorder %s35, 1
    %p142 = por %p140, %p141
    %p143 = scmp.ne.s32.totalorder %s134, %s135
    %p144 = scmp.eq.s32.totalorder %s35, 0
    %p145 = por %p143, %p144
    %p146 = scmp.ne.s32.totalorder %s134, %s135
    %p147 = scmp.eq.s32.totalorder %s36, 1
    %p148 = por %p146, %p147
    %p150 = scmp.ne.s32.totalorder %s135, %s149
    %p151 = scmp.eq.s32.totalorder %s36, 0
    %p152 = por %p150, %p151
    %s154 = sadd.s32 %s153, 1
    %p157 = scmp.eq.s32.totalorder %s30, 1
    %p158 = scmp.ne.s32.totalorder %s153, %s155
    %p159 = scmp.eq.s32.totalorder %s30, 0
    %p160 = por %p158, %p159
    %p161 = scmp.ne.s32.totalorder %s153, %s155
    %p162 = scmp.eq.s32.totalorder %s35, 1
    %p163 = por %p161, %p162
    %p164 = scmp.ne.s32.totalorder %s155, %s156
    %p165 = scmp.eq.s32.totalorder %s35, 0
    %p166 = por %p164, %p165
    %p167 = scmp.ne.s32.totalorder %s155, %s156
    %p168 = scmp.eq.s32.totalorder %s36, 1
    %p169 = por %p167, %p168
    %p171 = scmp.ne.s32.totalorder %s156, %s170
    %p172 = scmp.eq.s32.totalorder %s36, 0
    %p173 = por %p171, %p172
    %s175 = sadd.s32 %s174, 1
    %p178 = scmp.eq.s32.totalorder %s30, 1
    %p179 = scmp.ne.s32.totalorder %s174, %s176
    %p180 = scmp.eq.s32.totalorder %s30, 0
    %p181 = por %p179, %p180
    %p182 = scmp.ne.s32.totalorder %s174, %s176
    %p183 = scmp.eq.s32.totalorder %s35, 1
    %p184 = por %p182, %p183
    %p185 = scmp.ne.s32.totalorder %s176, %s177
    %p186 = scmp.eq.s32.totalorder %s35, 0
    %p187 = por %p185, %p186
    %p188 = scmp.ne.s32.totalorder %s176, %s177
    %p189 = scmp.eq.s32.totalorder %s36, 1
    %p190 = por %p188, %p189
    %p192 = scmp.ne.s32.totalorder %s177, %s191
    %p193 = scmp.eq.s32.totalorder %s36, 0
    %p194 = por %p192, %p193
    %s196 = sadd.s32 %s195, 1
    %p199 = scmp.eq.s32.totalorder %s30, 1
    %p200 = scmp.ne.s32.totalorder %s195, %s197
    %p201 = scmp.eq.s32.totalorder %s30, 0
    %p202 = por %p200, %p201
    %p203 = scmp.ne.s32.totalorder %s195, %s197
    %p204 = scmp.eq.s32.totalorder %s35, 1
    %p205 = por %p203, %p204
    %p206 = scmp.ne.s32.totalorder %s197, %s198
    %p207 = scmp.eq.s32.totalorder %s35, 0
    %p208 = por %p206, %p207
    %p209 = scmp.ne.s32.totalorder %s197, %s198
    %p210 = scmp.eq.s32.totalorder %s36, 1
    %p211 = por %p209, %p210
    %p213 = scmp.ne.s32.totalorder %s198, %s212
    %p214 = scmp.eq.s32.totalorder %s36, 0
    %p215 = por %p213, %p214
    %s217 = sadd.s32 %s216, 1
    %p220 = scmp.eq.s32.totalorder %s30, 1
    %p221 = scmp.ne.s32.totalorder %s216, %s218
    %p222 = scmp.eq.s32.totalorder %s30, 0
    %p223 = por %p221, %p222
    %p224 = scmp.ne.s32.totalorder %s216, %s218
    %p225 = scmp.eq.s32.totalorder %s35, 1
    %p226 = por %p224, %p225
    %p227 = scmp.ne.s32.totalorder %s218, %s219
    %p228 = scmp.eq.s32.totalorder %s35, 0
    %p229 = por %p227, %p228
    %p230 = scmp.ne.s32.totalorder %s218, %s219
    %p231 = scmp.eq.s32.totalorder %s36, 1
    %p232 = por %p230, %p231
    %p234 = scmp.ne.s32.totalorder %s219, %s233
    %p235 = scmp.eq.s32.totalorder %s36, 0
    %p236 = por %p234, %p235
    %s238 = sadd.s32 %s237, 1
    %p241 = scmp.eq.s32.totalorder %s30, 1
    %p242 = scmp.ne.s32.totalorder %s237, %s239
    %p243 = scmp.eq.s32.totalorder %s30, 0
    %p244 = por %p242, %p243
    %p245 = scmp.ne.s32.totalorder %s237, %s239
    %p246 = scmp.eq.s32.totalorder %s35, 1
    %p247 = por %p245, %p246
    %p248 = scmp.ne.s32.totalorder %s239, %s240
    %p249 = scmp.eq.s32.totalorder %s35, 0
    %p250 = por %p248, %p249
    %p251 = scmp.ne.s32.totalorder %s239, %s240
    %p252 = scmp.eq.s32.totalorder %s36, 1
    %p253 = por %p251, %p252
    %p255 = scmp.ne.s32.totalorder %s240, %s254
    %p256 = scmp.eq.s32.totalorder %s36, 0
    %p257 = por %p255, %p256
    %s259 = sadd.s32 %s258, 1
    %p262 = scmp.eq.s32.totalorder %s30, 1
    %p263 = scmp.ne.s32.totalorder %s258, %s260
    %p264 = scmp.eq.s32.totalorder %s30, 0
    %p265 = por %p263, %p264
    %p266 = scmp.ne.s32.totalorder %s258, %s260
    %p267 = scmp.eq.s32.totalorder %s35, 1
    %p268 = por %p266, %p267
    %p269 = scmp.ne.s32.totalorder %s260, %s261
    %p270 = scmp.eq.s32.totalorder %s35, 0
    %p271 = por %p269, %p270
    %p272 = scmp.ne.s32.totalorder %s260, %s261
    %p273 = scmp.eq.s32.totalorder %s36, 1
    %p274 = por %p272, %p273
    %p276 = scmp.ne.s32.totalorder %s261, %s275
    %p277 = scmp.eq.s32.totalorder %s36, 0
    %p278 = por %p276, %p277
    %s280 = sadd.s32 %s279, 1
    %p283 = scmp.eq.s32.totalorder %s30, 1
    %p284 = scmp.ne.s32.totalorder %s279, %s281
    %p285 = scmp.eq.s32.totalorder %s30, 0
    %p286 = por %p284, %p285
    %p287 = scmp.ne.s32.totalorder %s279, %s281
    %p288 = scmp.eq.s32.totalorder %s35, 1
    %p289 = por %p287, %p288
    %p290 = scmp.ne.s32.totalorder %s281, %s282
    %p291 = scmp.eq.s32.totalorder %s35, 0
    %p292 = por %p290, %p291
    %p293 = scmp.ne.s32.totalorder %s281, %s282
    %p294 = scmp.eq.s32.totalorder %s36, 1
    %p295 = por %p293, %p294
    %p297 = scmp.ne.s32.totalorder %s282, %s296
    %p298 = scmp.eq.s32.totalorder %s36, 0
    %p299 = por %p297, %p298
    %s301 = sadd.s32 %s300, 1
    %p304 = scmp.eq.s32.totalorder %s30, 1
    %p305 = scmp.ne.s32.totalorder %s300, %s302
    %p306 = scmp.eq.s32.totalorder %s30, 0
    %p307 = por %p305, %p306
    %p308 = scmp.ne.s32.totalorder %s300, %s302
    %p309 = scmp.eq.s32.totalorder %s35, 1
    %p310 = por %p308, %p309
    %p311 = scmp.ne.s32.totalorder %s302, %s303
    %p312 = scmp.eq.s32.totalorder %s35, 0
    %p313 = por %p311, %p312
    %p314 = scmp.ne.s32.totalorder %s302, %s303
    %p315 = scmp.eq.s32.totalorder %s36, 1
    %p316 = por %p314, %p315
    %p318 = scmp.ne.s32.totalorder %s303, %s317
    %p319 = scmp.eq.s32.totalorder %s36, 0
    %p320 = por %p318, %p319
    %s322 = sadd.s32 %s321, 1
    %p325 = scmp.eq.s32.totalorder %s30, 1
    %p326 = scmp.ne.s32.totalorder %s321, %s323
    %p327 = scmp.eq.s32.totalorder %s30, 0
    %p328 = por %p326, %p327
    %p329 = scmp.ne.s32.totalorder %s321, %s323
    %p330 = scmp.eq.s32.totalorder %s35, 1
    %p331 = por %p329, %p330
    %p332 = scmp.ne.s32.totalorder %s323, %s324
    %p333 = scmp.eq.s32.totalorder %s35, 0
    %p334 = por %p332, %p333
    %p335 = scmp.ne.s32.totalorder %s323, %s324
    %p336 = scmp.eq.s32.totalorder %s36, 1
    %p337 = por %p335, %p336
    %p339 = scmp.ne.s32.totalorder %s324, %s338
    %p340 = scmp.eq.s32.totalorder %s36, 0
    %p341 = por %p339, %p340
    %s343 = sadd.s32 %s342, 1
    %p346 = scmp.eq.s32.totalorder %s30, 1
    %p347 = scmp.ne.s32.totalorder %s342, %s344
    %p348 = scmp.eq.s32.totalorder %s30, 0
    %p349 = por %p347, %p348
    %p350 = scmp.ne.s32.totalorder %s342, %s344
    %p351 = scmp.eq.s32.totalorder %s35, 1
    %p352 = por %p350, %p351
    %p353 = scmp.ne.s32.totalorder %s344, %s345
    %p354 = scmp.eq.s32.totalorder %s35, 0
    %p355 = por %p353, %p354
    %p356 = scmp.ne.s32.totalorder %s344, %s345
    %p357 = scmp.eq.s32.totalorder %s36, 1
    %p358 = por %p356, %p357
    %p360 = scmp.ne.s32.totalorder %s345, %s359
    %p361 = scmp.eq.s32.totalorder %s36, 0
    %p362 = por %p360, %p361
    %s364 = sadd.s32 %s363, 1
    %p367 = scmp.eq.s32.totalorder %s30, 1
    %p368 = scmp.ne.s32.totalorder %s363, %s365
    %p369 = scmp.eq.s32.totalorder %s30, 0
    %p370 = por %p368, %p369
    %p371 = scmp.ne.s32.totalorder %s363, %s365
    %p372 = scmp.eq.s32.totalorder %s35, 1
    %p373 = por %p371, %p372
    %p374 = scmp.ne.s32.totalorder %s365, %s366
    %p375 = scmp.eq.s32.totalorder %s35, 0
    %p376 = por %p374, %p375
    %p377 = scmp.ne.s32.totalorder %s365, %s366
    %p378 = scmp.eq.s32.totalorder %s36, 1
    %p379 = por %p377, %p378
    %p381 = scmp.ne.s32.totalorder %s366, %s380
    %p382 = scmp.eq.s32.totalorder %s36, 0
    %p383 = por %p381, %p382
    %s385 = sadd.s32 %s384, 1
    %p388 = scmp.eq.s32.totalorder %s30, 1
    %p389 = scmp.ne.s32.totalorder %s384, %s386
    %p390 = scmp.eq.s32.totalorder %s30, 0
    %p391 = por %p389, %p390
    %p392 = scmp.ne.s32.totalorder %s384, %s386
    %p393 = scmp.eq.s32.totalorder %s35, 1
    %p394 = por %p392, %p393
    %p395 = scmp.ne.s32.totalorder %s386, %s387
    %p396 = scmp.eq.s32.totalorder %s35, 0
    %p397 = por %p395, %p396
    %p398 = scmp.ne.s32.totalorder %s386, %s387
    %p399 = scmp.eq.s32.totalorder %s36, 1
    %p400 = por %p398, %p399
    %p402 = scmp.ne.s32.totalorder %s387, %s401
    %p403 = scmp.eq.s32.totalorder %s36, 0
    %p404 = por %p402, %p403
    %s406 = sadd.s32 %s405, 1
    %p409 = scmp.eq.s32.totalorder %s30, 1
    %p410 = scmp.ne.s32.totalorder %s405, %s407
    %p411 = scmp.eq.s32.totalorder %s30, 0
    %p412 = por %p410, %p411
    %p413 = scmp.ne.s32.totalorder %s405, %s407
    %p414 = scmp.eq.s32.totalorder %s35, 1
    %p415 = por %p413, %p414
    %p416 = scmp.ne.s32.totalorder %s407, %s408
    %p417 = scmp.eq.s32.totalorder %s35, 0
    %p418 = por %p416, %p417
    %p419 = scmp.ne.s32.totalorder %s407, %s408
    %p420 = scmp.eq.s32.totalorder %s36, 1
    %p421 = por %p419, %p420
    %p423 = scmp.ne.s32.totalorder %s408, %s422
    %p424 = scmp.eq.s32.totalorder %s36, 0
    %p425 = por %p423, %p424
    %s427 = sadd.s32 %s426, 1
    %p430 = scmp.eq.s32.totalorder %s30, 1
    %p431 = scmp.ne.s32.totalorder %s426, %s428
    %p432 = scmp.eq.s32.totalorder %s30, 0
    %p433 = por %p431, %p432
    %p434 = scmp.ne.s32.totalorder %s426, %s428
    %p435 = scmp.eq.s32.totalorder %s35, 1
    %p436 = por %p434, %p435
    %p437 = scmp.ne.s32.totalorder %s428, %s429
    %p438 = scmp.eq.s32.totalorder %s35, 0
    %p439 = por %p437, %p438
    %p440 = scmp.ne.s32.totalorder %s428, %s429
    %p441 = scmp.eq.s32.totalorder %s36, 1
    %p442 = por %p440, %p441
    %p444 = scmp.ne.s32.totalorder %s429, %s443
    %p445 = scmp.eq.s32.totalorder %s36, 0
    %p446 = por %p444, %p445
    %s448 = sadd.s32 %s447, 1
    %p451 = scmp.eq.s32.totalorder %s30, 1
    %p452 = scmp.ne.s32.totalorder %s447, %s449
    %p453 = scmp.eq.s32.totalorder %s30, 0
    %p454 = por %p452, %p453
    %p455 = scmp.ne.s32.totalorder %s447, %s449
    %p456 = scmp.eq.s32.totalorder %s35, 1
    %p457 = por %p455, %p456
    %p458 = scmp.ne.s32.totalorder %s449, %s450
    %p459 = scmp.eq.s32.totalorder %s35, 0
    %p460 = por %p458, %p459
    %p461 = scmp.ne.s32.totalorder %s449, %s450
    %p462 = scmp.eq.s32.totalorder %s36, 1
    %p463 = por %p461, %p462
    %p465 = scmp.ne.s32.totalorder %s450, %s464
    %p466 = scmp.eq.s32.totalorder %s36, 0
    %p467 = por %p465, %p466
    %s469 = sadd.s32 %s468, 1
    %p472 = scmp.eq.s32.totalorder %s30, 1
    %p473 = scmp.ne.s32.totalorder %s468, %s470
    %p474 = scmp.eq.s32.totalorder %s30, 0
    %p475 = por %p473, %p474
    %p476 = scmp.ne.s32.totalorder %s468, %s470
    %p477 = scmp.eq.s32.totalorder %s35, 1
    %p478 = por %p476, %p477
    %p479 = scmp.ne.s32.totalorder %s470, %s471
    %p480 = scmp.eq.s32.totalorder %s35, 0
    %p481 = por %p479, %p480
    %p482 = scmp.ne.s32.totalorder %s470, %s471
    %p483 = scmp.eq.s32.totalorder %s36, 1
    %p484 = por %p482, %p483
    %p486 = scmp.ne.s32.totalorder %s471, %s485
    %p487 = scmp.eq.s32.totalorder %s36, 0
    %p488 = por %p486, %p487
    %s490 = sadd.s32 %s489, 1
    %p493 = scmp.eq.s32.totalorder %s30, 1
    %p494 = scmp.ne.s32.totalorder %s489, %s491
    %p495 = scmp.eq.s32.totalorder %s30, 0
    %p496 = por %p494, %p495
    %p497 = scmp.ne.s32.totalorder %s489, %s491
    %p498 = scmp.eq.s32.totalorder %s35, 1
    %p499 = por %p497, %p498
    %p500 = scmp.ne.s32.totalorder %s491, %s492
    %p501 = scmp.eq.s32.totalorder %s35, 0
    %p502 = por %p500, %p501
    %p503 = scmp.ne.s32.totalorder %s491, %s492
    %p504 = scmp.eq.s32.totalorder %s36, 1
    %p505 = por %p503, %p504
    %p507 = scmp.ne.s32.totalorder %s492, %s506
    %p508 = scmp.eq.s32.totalorder %s36, 0
    %p509 = por %p507, %p508
    %s511 = sadd.s32 %s510, 1
    %p514 = scmp.eq.s32.totalorder %s30, 1
    %p515 = scmp.ne.s32.totalorder %s510, %s512
    %p516 = scmp.eq.s32.totalorder %s30, 0
    %p517 = por %p515, %p516
    %p518 = scmp.ne.s32.totalorder %s510, %s512
    %p519 = scmp.eq.s32.totalorder %s35, 1
    %p520 = por %p518, %p519
    %p521 = scmp.ne.s32.totalorder %s512, %s513
    %p522 = scmp.eq.s32.totalorder %s35, 0
    %p523 = por %p521, %p522
    %p524 = scmp.ne.s32.totalorder %s512, %s513
    %p525 = scmp.eq.s32.totalorder %s36, 1
    %p526 = por %p524, %p525
    %p528 = scmp.ne.s32.totalorder %s513, %s527
    %p529 = scmp.eq.s32.totalorder %s36, 0
    %p530 = por %p528, %p529
    %s532 = sadd.s32 %s531, 1
    %p535 = scmp.eq.s32.totalorder %s30, 1
    %p536 = scmp.ne.s32.totalorder %s531, %s533
    %p537 = scmp.eq.s32.totalorder %s30, 0
    %p538 = por %p536, %p537
    %p539 = scmp.ne.s32.totalorder %s531, %s533
    %p540 = scmp.eq.s32.totalorder %s35, 1
    %p541 = por %p539, %p540
    %p542 = scmp.ne.s32.totalorder %s533, %s534
    %p543 = scmp.eq.s32.totalorder %s35, 0
    %p544 = por %p542, %p543
    %p545 = scmp.ne.s32.totalorder %s533, %s534
    %p546 = scmp.eq.s32.totalorder %s36, 1
    %p547 = por %p545, %p546
    %p549 = scmp.ne.s32.totalorder %s534, %s548
    %p550 = scmp.eq.s32.totalorder %s36, 0
    %p551 = por %p549, %p550
    %s552 = ssub.s32 %s30, %s37
    %p553 = scmp.eq.s32.totalorder %s552, 0
    %s555 = sadd.s32 %s554, 1
    %s556 = scalar_select %p553, %s554, %s555
    %p559 = pneg %p553
    %p560 = scmp.eq.s32.totalorder %s30, 1
    %p561 = por %p559, %p560
    %p562 = scmp.ne.s32.totalorder %s554, %s557
    %p563 = scmp.eq.s32.totalorder %s30, 0
    %p564 = por %p562, %p563
    %p565 = scmp.ne.s32.totalorder %s554, %s557
    %p566 = scmp.eq.s32.totalorder %s35, 1
    %p567 = por %p565, %p566
    %p568 = scmp.ne.s32.totalorder %s557, %s558
    %p569 = scmp.eq.s32.totalorder %s35, 0
    %p570 = por %p568, %p569
    %p571 = scmp.ne.s32.totalorder %s557, %s558
    %p572 = scmp.eq.s32.totalorder %s36, 1
    %p573 = por %p571, %p572
    %p575 = scmp.ne.s32.totalorder %s558, %s574
    %p576 = scmp.eq.s32.totalorder %s36, 0
    %p577 = por %p575, %p576
    %p578 = scmp.le.s32.totalorder 1, %s30
    %p579 = scmp.lt.s32.totalorder %s30, 3
    %p580 = pnand %p578, %p579
    %p581 = pneg %p580
    // Predicated region
    $region9: #{repsam_forward.1} parent=5 // pred_check
      _
    $region10: #{repsam_forward.1} parent=5 // pred_check_branch
      %583 = sbr.rel (%p580) target = $region12
    $region11: #{repsam_forward.1} parent=5 // pred_region
      %s584 = ssub.s32 %s30, 1
      // Predicated region
      $region13: #{repsam_forward.1} parent=11 // pred_check
        %p585 = pneg %p103
      $region14: #{repsam_forward.1} parent=11 // pred_check_branch
        %587 = sbr.rel (%p585) target = $region16
      $region15: #{repsam_forward.1} parent=11 // pred_region
        _
      $region16: #{repsam_forward.1} parent=11 // pred_fallthru
        _
      // Predicated region
      $region17: #{repsam_forward.1} parent=11 // pred_check
        %p588 = pneg %p124
      $region18: #{repsam_forward.1} parent=11 // pred_check_branch
        %590 = sbr.rel (%p588) target = $region20
      $region19: #{repsam_forward.1} parent=11 // pred_region
        _
      $region20: #{repsam_forward.1} parent=11 // pred_fallthru
        _
      // Predicated region
      $region21: #{repsam_forward.1} parent=11 // pred_check
        %p591 = pneg %p145
      $region22: #{repsam_forward.1} parent=11 // pred_check_branch
        %593 = sbr.rel (%p591) target = $region24
      $region23: #{repsam_forward.1} parent=11 // pred_region
        _
      $region24: #{repsam_forward.1} parent=11 // pred_fallthru
        _
      // Predicated region
      $region25: #{repsam_forward.1} parent=11 // pred_check
        %p594 = pneg %p166
      $region26: #{repsam_forward.1} parent=11 // pred_check_branch
        %596 = sbr.rel (%p594) target = $region28
      $region27: #{repsam_forward.1} parent=11 // pred_region
        _
      $region28: #{repsam_forward.1} parent=11 // pred_fallthru
        _
      // Predicated region
      $region29: #{repsam_forward.1} parent=11 // pred_check
        %p597 = pneg %p187
      $region30: #{repsam_forward.1} parent=11 // pred_check_branch
        %599 = sbr.rel (%p597) target = $region32
      $region31: #{repsam_forward.1} parent=11 // pred_region
        _
      $region32: #{repsam_forward.1} parent=11 // pred_fallthru
        _
      // Predicated region
      $region33: #{repsam_forward.1} parent=11 // pred_check
        %p600 = pneg %p208
      $region34: #{repsam_forward.1} parent=11 // pred_check_branch
        %602 = sbr.rel (%p600) target = $region36
      $region35: #{repsam_forward.1} parent=11 // pred_region
        _
      $region36: #{repsam_forward.1} parent=11 // pred_fallthru
        _
      // Predicated region
      $region37: #{repsam_forward.1} parent=11 // pred_check
        %p603 = pneg %p229
      $region38: #{repsam_forward.1} parent=11 // pred_check_branch
        %605 = sbr.rel (%p603) target = $region40
      $region39: #{repsam_forward.1} parent=11 // pred_region
        _
      $region40: #{repsam_forward.1} parent=11 // pred_fallthru
        _
      // Predicated region
      $region41: #{repsam_forward.1} parent=11 // pred_check
        %p606 = pneg %p250
      $region42: #{repsam_forward.1} parent=11 // pred_check_branch
        %608 = sbr.rel (%p606) target = $region44
      $region43: #{repsam_forward.1} parent=11 // pred_region
        _
      $region44: #{repsam_forward.1} parent=11 // pred_fallthru
        _
      // Predicated region
      $region45: #{repsam_forward.1} parent=11 // pred_check
        %p609 = pneg %p271
      $region46: #{repsam_forward.1} parent=11 // pred_check_branch
        %611 = sbr.rel (%p609) target = $region48
      $region47: #{repsam_forward.1} parent=11 // pred_region
        _
      $region48: #{repsam_forward.1} parent=11 // pred_fallthru
        _
      // Predicated region
      $region49: #{repsam_forward.1} parent=11 // pred_check
        %p612 = pneg %p292
      $region50: #{repsam_forward.1} parent=11 // pred_check_branch
        %614 = sbr.rel (%p612) target = $region52
      $region51: #{repsam_forward.1} parent=11 // pred_region
        _
      $region52: #{repsam_forward.1} parent=11 // pred_fallthru
        _
      // Predicated region
      $region53: #{repsam_forward.1} parent=11 // pred_check
        %p615 = pneg %p313
      $region54: #{repsam_forward.1} parent=11 // pred_check_branch
        %617 = sbr.rel (%p615) target = $region56
      $region55: #{repsam_forward.1} parent=11 // pred_region
        _
      $region56: #{repsam_forward.1} parent=11 // pred_fallthru
        _
      // Predicated region
      $region57: #{repsam_forward.1} parent=11 // pred_check
        %p618 = pneg %p334
      $region58: #{repsam_forward.1} parent=11 // pred_check_branch
        %620 = sbr.rel (%p618) target = $region60
      $region59: #{repsam_forward.1} parent=11 // pred_region
        _
      $region60: #{repsam_forward.1} parent=11 // pred_fallthru
        _
      // Predicated region
      $region61: #{repsam_forward.1} parent=11 // pred_check
        %p621 = pneg %p355
      $region62: #{repsam_forward.1} parent=11 // pred_check_branch
        %623 = sbr.rel (%p621) target = $region64
      $region63: #{repsam_forward.1} parent=11 // pred_region
        _
      $region64: #{repsam_forward.1} parent=11 // pred_fallthru
        _
      // Predicated region
      $region65: #{repsam_forward.1} parent=11 // pred_check
        %p624 = pneg %p376
      $region66: #{repsam_forward.1} parent=11 // pred_check_branch
        %626 = sbr.rel (%p624) target = $region68
      $region67: #{repsam_forward.1} parent=11 // pred_region
        _
      $region68: #{repsam_forward.1} parent=11 // pred_fallthru
        _
      // Predicated region
      $region69: #{repsam_forward.1} parent=11 // pred_check
        %p627 = pneg %p397
      $region70: #{repsam_forward.1} parent=11 // pred_check_branch
        %629 = sbr.rel (%p627) target = $region72
      $region71: #{repsam_forward.1} parent=11 // pred_region
        _
      $region72: #{repsam_forward.1} parent=11 // pred_fallthru
        _
      // Predicated region
      $region73: #{repsam_forward.1} parent=11 // pred_check
        %p630 = pneg %p418
      $region74: #{repsam_forward.1} parent=11 // pred_check_branch
        %632 = sbr.rel (%p630) target = $region76
      $region75: #{repsam_forward.1} parent=11 // pred_region
        _
      $region76: #{repsam_forward.1} parent=11 // pred_fallthru
        _
      // Predicated region
      $region77: #{repsam_forward.1} parent=11 // pred_check
        %p633 = pneg %p439
      $region78: #{repsam_forward.1} parent=11 // pred_check_branch
        %635 = sbr.rel (%p633) target = $region80
      $region79: #{repsam_forward.1} parent=11 // pred_region
        _
      $region80: #{repsam_forward.1} parent=11 // pred_fallthru
        _
      // Predicated region
      $region81: #{repsam_forward.1} parent=11 // pred_check
        %p636 = pneg %p460
      $region82: #{repsam_forward.1} parent=11 // pred_check_branch
        %638 = sbr.rel (%p636) target = $region84
      $region83: #{repsam_forward.1} parent=11 // pred_region
        _
      $region84: #{repsam_forward.1} parent=11 // pred_fallthru
        _
      // Predicated region
      $region85: #{repsam_forward.1} parent=11 // pred_check
        %p639 = pneg %p481
      $region86: #{repsam_forward.1} parent=11 // pred_check_branch
        %641 = sbr.rel (%p639) target = $region88
      $region87: #{repsam_forward.1} parent=11 // pred_region
        _
      $region88: #{repsam_forward.1} parent=11 // pred_fallthru
        _
      // Predicated region
      $region89: #{repsam_forward.1} parent=11 // pred_check
        %p642 = pneg %p502
      $region90: #{repsam_forward.1} parent=11 // pred_check_branch
        %644 = sbr.rel (%p642) target = $region92
      $region91: #{repsam_forward.1} parent=11 // pred_region
        _
      $region92: #{repsam_forward.1} parent=11 // pred_fallthru
        _
      // Predicated region
      $region93: #{repsam_forward.1} parent=11 // pred_check
        %p645 = pneg %p523
      $region94: #{repsam_forward.1} parent=11 // pred_check_branch
        %647 = sbr.rel (%p645) target = $region96
      $region95: #{repsam_forward.1} parent=11 // pred_region
        _
      $region96: #{repsam_forward.1} parent=11 // pred_fallthru
        _
      // Predicated region
      $region97: #{repsam_forward.1} parent=11 // pred_check
        %p648 = pneg %p544
      $region98: #{repsam_forward.1} parent=11 // pred_check_branch
        %650 = sbr.rel (%p648) target = $region100
      $region99: #{repsam_forward.1} parent=11 // pred_region
        _
      $region100: #{repsam_forward.1} parent=11 // pred_fallthru
        _
    $region12: #{repsam_forward.1} parent=5 // pred_fallthru
      _
    %p651 = scmp.lt.s32.totalorder %s30, 2
    // Predicated region
    $region101: #{repsam_forward.1} parent=5 // pred_check
      %p652 = pneg %p651
    $region102: #{repsam_forward.1} parent=5 // pred_check_branch
      %654 = sbr.rel (%p652) target = $region104
    $region103: #{repsam_forward.1} parent=5 // pred_region
      // Predicated region
      $region105: #{repsam_forward.1} parent=103 // pred_check
        %p655 = pneg %p50
      $region106: #{repsam_forward.1} parent=103 // pred_check_branch
        %657 = sbr.rel (%p655) target = $region108
      $region107: #{repsam_forward.1} parent=103 // pred_region
        %p658 = scmp.lt.s32.totalorder %s30, 1
        %s659 = scalar_select %p658, %s30, 1
        %s660 = smul.addr %s659, 4
        %s661 = smul.addr %s660, 4
        %s662 = scalar_lea.vmem %s0, %s661
      $region108: #{repsam_forward.1} parent=103 // pred_fallthru
        _
      // Predicated region
      $region109: #{repsam_forward.1} parent=103 // pred_check
        %p663 = pneg %p76
      $region110: #{repsam_forward.1} parent=103 // pred_check_branch
        %665 = sbr.rel (%p663) target = $region112
      $region111: #{repsam_forward.1} parent=103 // pred_region
        %p666 = scmp.lt.s32.totalorder %s30, 1
        %s667 = scalar_select %p666, %s30, 1
        %s668 = smul.addr %s667, 4
        %s669 = scalar_lea.vmem %s1, %s668
      $region112: #{repsam_forward.1} parent=103 // pred_fallthru
        _
    $region104: #{repsam_forward.1} parent=5 // pred_fallthru
      _
    %p670 = scmp.le.s32.totalorder 1, %s30
    %p671 = scmp.lt.s32.totalorder %s30, 3
    %p672 = pnand %p670, %p671
    %p673 = pneg %p672
    // Predicated region
    $region113: #{repsam_forward.1} parent=5 // pred_check
      _
    $region114: #{repsam_forward.1} parent=5 // pred_check_branch
      %675 = sbr.rel (%p672) target = $region116
    $region115: #{repsam_forward.1} parent=5 // pred_region
      %s676 = ssub.s32 %s30, 1
      %p677 = scmp.lt.s32.totalorder %s35, 1
      %s678 = scalar_select %p677, %s35, 1
      %s679 = smul.addr %s678, 4
      %s680 = smul.addr %s679, 4
      %s681 = scalar_lea.vmem %s0, %s680
      %p682 = pneg %p56
      %p683 = pneg %p53
      %p684 = scmp.lt.s32.totalorder %s35, 1
      %s685 = scalar_select %p684, %s35, 1
      %s686 = smul.addr %s685, 4
      %s687 = scalar_lea.vmem %s1, %s686
      %p688 = pneg %p82
      %p689 = pneg %p79
      %p690 = pneg %p103
      %p691 = pneg %p100
      %p692 = pneg %p124
      %p693 = pneg %p121
      %p694 = pneg %p145
      %p695 = pneg %p142
      %p696 = pneg %p166
      %p697 = pneg %p163
      %p698 = pneg %p187
      %p699 = pneg %p184
      %p700 = pneg %p208
      %p701 = pneg %p205
      %p702 = pneg %p229
      %p703 = pneg %p226
      %p704 = pneg %p250
      %p705 = pneg %p247
      %p706 = pneg %p271
      %p707 = pneg %p268
      %p708 = pneg %p292
      %p709 = pneg %p289
      %p710 = pneg %p313
      %p711 = pneg %p310
      %p712 = pneg %p334
      %p713 = pneg %p331
      %p714 = pneg %p355
      %p715 = pneg %p352
      %p716 = pneg %p376
      %p717 = pneg %p373
      %p718 = pneg %p397
      %p719 = pneg %p394
      %p720 = pneg %p418
      %p721 = pneg %p415
      %p722 = pneg %p439
      %p723 = pneg %p436
      %p724 = pneg %p460
      %p725 = pneg %p457
      %p726 = pneg %p481
      %p727 = pneg %p478
      %p728 = pneg %p502
      %p729 = pneg %p499
      %p730 = pneg %p523
      %p731 = pneg %p520
      %p732 = pneg %p544
      %p733 = pneg %p541
      %p734 = pneg %p570
      %p735 = pneg %p567
      %p736 = scmp.lt.s32.totalorder %s35, 1
      %s737 = scalar_select %p736, %s35, 1
      %s738 = scalar_lea.vmem %s24, %s737
      %p739 = scmp.lt.s32.totalorder %s35, 1
      %s740 = scalar_select %p739, %s35, 1
      %s741 = smul.addr %s740, 4
      %s742 = smul.addr %s741, 4
      %s743 = scalar_lea.vmem %s0, %s742
      %p744 = scmp.lt.s32.totalorder %s35, 1
      %s745 = scalar_select %p744, %s35, 1
      %s746 = smul.addr %s745, 4
      %s747 = scalar_lea.vmem %s1, %s746
      %p748 = scmp.lt.s32.totalorder %s35, 1
      %s749 = scalar_select %p748, %s35, 1
      %s750 = scalar_lea.vmem %s24, %s749
      %v752 = vld [vmem:[%s5] sm:$0xf]
      %v753 = vld [vmem:[%s743] sm:$0xff]
      %v754 = vld [vmem:[%s743 + $0x8] sm:$0xff]
      %v755 = vld [vmem:[%s2] sm:$0xf]
      %v756 = vld [vmem:[%s2 + $0x4] sm:$0xf]
      %v757 = vld [vmem:[%s2 + $0x8] sm:$0xf]
      %v758 = vld [vmem:[%s2 + $0xc] sm:$0xf]
      %v759 = vld [vmem:[%s2 + $0x10] sm:$0xf]
      %v760 = vld [vmem:[%s2 + $0x14] sm:$0xf]
      %v761 = vld [vmem:[%s2 + $0x18] sm:$0xf]
      %v762 = vld [vmem:[%s2 + $0x1c] sm:$0xf]
      %v763 = vld [vmem:[%s2 + $0x20] sm:$0xf]
      %v764 = vld [vmem:[%s2 + $0x24] sm:$0xf]
      %v765 = vld [vmem:[%s2 + $0x28] sm:$0xf]
      %v766 = vld [vmem:[%s2 + $0x2c] sm:$0xf]
      %v767 = vld [vmem:[%s2 + $0x30] sm:$0xf]
      %v768 = vld [vmem:[%s2 + $0x34] sm:$0xf]
      %v769 = vld [vmem:[%s2 + $0x38] sm:$0xf]
      %v770 = vld [vmem:[%s2 + $0x3c] sm:$0xf]
      %v771 = vld [vmem:[%s2 + $0x40] sm:$0xf]
      %v772 = vld [vmem:[%s2 + $0x44] sm:$0xf]
      %v773 = vld [vmem:[%s2 + $0x48] sm:$0xf]
      %v774 = vld [vmem:[%s2 + $0x4c] sm:$0xf]
      %v775 = vld [vmem:[%s2 + $0x50] sm:$0xf]
      %v776 = vld [vmem:[%s2 + $0x54] sm:$0xf]
      %v777 = vld [vmem:[%s2 + $0x58] sm:$0xf]
      %v778 = vld [vmem:[%s2 + $0x5c] sm:$0xf]
      %v779 = vld [vmem:[%s3] sm:$0x1]
      %v781 = vlaneseq
      %v782 = vshrl.u32 %v781, 7
      %v783 = vsub.s32 0, %v782
      %v784 = vrot.slane %v779, %v783
      %v788 = vunpack.c.l.b16 %v753
      %v789 = vunpack.c.h.b16 %v753
      %v790 = vunpack.c.l.b16 %v754
      %v791 = vunpack.c.h.b16 %v754
      %v792 = vpack.c.b16 %v790, %v788
      %v793 = vpack.c.b16 %v791, %v789
      %v819 = vunpack.c.l.b16 %v755
      %v820 = vunpack.c.l.b16 %v756
      %v821 = vunpack.c.l.b16 %v757
      %v822 = vunpack.c.l.b16 %v758
      %v823 = vunpack.c.l.b16 %v759
      %v824 = vunpack.c.l.b16 %v760
      %v825 = vunpack.c.l.b16 %v761
      %v826 = vunpack.c.l.b16 %v762
      %v827 = vunpack.c.l.b16 %v763
      %v828 = vunpack.c.l.b16 %v764
      %v829 = vunpack.c.l.b16 %v765
      %v830 = vunpack.c.l.b16 %v766
      %v831 = vunpack.c.l.b16 %v767
      %v832 = vunpack.c.l.b16 %v768
      %v833 = vunpack.c.l.b16 %v769
      %v834 = vunpack.c.l.b16 %v770
      %v835 = vunpack.c.l.b16 %v771
      %v836 = vunpack.c.l.b16 %v772
      %v837 = vunpack.c.l.b16 %v773
      %v838 = vunpack.c.l.b16 %v774
      %v839 = vunpack.c.l.b16 %v775
      %v840 = vunpack.c.l.b16 %v776
      %v841 = vunpack.c.l.b16 %v777
      %v842 = vunpack.c.l.b16 %v778
      %v843 = vpack.c.b16 %v820, %v819
      %v844 = vpack.c.b16 %v822, %v821
      %v845 = vpack.c.b16 %v824, %v823
      %v846 = vpack.c.b16 %v826, %v825
      %v847 = vpack.c.b16 %v828, %v827
      %v848 = vpack.c.b16 %v830, %v829
      %v849 = vpack.c.b16 %v832, %v831
      %v850 = vpack.c.b16 %v834, %v833
      %v851 = vpack.c.b16 %v836, %v835
      %v852 = vpack.c.b16 %v838, %v837
      %v853 = vpack.c.b16 %v840, %v839
      %v854 = vpack.c.b16 %v842, %v841
      %vm867 = vcmask 523264
      %v869 = vsel %vm867, %v793, 0
      %871 = vmatprep.subr.bf16.mxu0 0
      %872 = vmatpush1.bf16.msra.mxu0 %v850
      %873 = vmatprep.subr.bf16.mxu0 0
      %874 = vmatpush1.bf16.msra.mxu0 %v849
      %875 = vmatprep.subr.bf16.mxu0 0
      %876 = vmatpush1.bf16.msra.mxu0 %v848
      %877 = vmatprep.subr.bf16.mxu0 0
      %878 = vmatpush1.bf16.msra.mxu0 %v847
      %879 = vmatprep.subr.bf16.mxu0 0
      %880 = vmatpush1.bf16.msra.mxu0 %v846
      %881 = vmatprep.subr.bf16.mxu0 0
      %882 = vmatpush1.bf16.msra.mxu0 %v845
      %883 = vmatprep.subr.bf16.mxu0 0
      %884 = vmatpush1.bf16.msra.mxu0 %v844
      %885 = vmatprep.subr.bf16.mxu0 0
      %886 = vmatpush1.bf16.msra.mxu0 %v843
      %887 = vmatprep.subr.bf16.mxu0 0
      %888 = vmatpush2.bf16.msra.mxu0 0
      %889 = vmatprep.subr.bf16.mxu0 0
      %890 = vmatpush2.bf16.msra.mxu0 0
      %891 = vmatprep.subr.bf16.mxu0 0
      %892 = vmatpush2.bf16.msra.mxu0 0
      %893 = vmatprep.subr.bf16.mxu0 0
      %894 = vmatpush2.bf16.msra.mxu0 0
      %895 = vmatprep.subr.bf16.mxu0 0
      %896 = vmatpush2.bf16.msra.mxu0 %v854
      %897 = vmatprep.subr.bf16.mxu0 0
      %898 = vmatpush2.bf16.msra.mxu0 %v853
      %899 = vmatprep.subr.bf16.mxu0 0
      %900 = vmatpush2.bf16.msra.mxu0 %v852
      %901 = vmatprep.subr.bf16.mxu0 0
      %902 = vmatpush2.bf16.msra.mxu0 %v851
      %903 = vmatprep.mubr.bf16.mxu0 %v869
      %904 = vmatmul.mubr.bf16.gmra.mxu0 %v792
      %v905 = vpop.f32.mrf.mxu0
      %v906 = vadd.f32 %v784, %v905
      %v907 = vpop.f32.mrf.mxu0
      %v908 = vpop.f32.mrf.mxu0
      %v909 = vadd.f32 %v784, %v908
      %v910 = vpop.f32.mrf.mxu0
      %911 = vdwg.mxu0
      %v912 = vld [vmem:[%s4] sm:$0xff]
      %v913 = vld [vmem:[%s4 + $0x8] sm:$0xff]
      %v914 = vadd.f32 %v906, %v912
      %v915 = vadd.f32 %v909, %v913
      %vm916 = vcmask 261120
      %v917 = vsel %vm916, %v914, 0.0
      %918 = vadd.xlane.f32.xlu0 %v917
      %v919 = vpop.xlane.xlu0 %918
      %v920 = vsel %vm916, %v915, 0.0
      %921 = vadd.xlane.f32.xlu0 %v920
      %v922 = vpop.xlane.xlu0 %921
      %v923 = vrcp.pop 32.0
      %v924 = vmul.f32 %v919, %v923
      %v925 = vmul.f32 %v922, %v923
      %v926 = vsub.f32 %v914, %v924
      %v927 = vsub.f32 %v915, %v925
      %v928 = vmul.f32 %v926, %v926
      %v929 = vmul.f32 %v927, %v927
      %v930 = vsel %vm916, %v928, 0.0
      %931 = vadd.xlane.f32.xlu0 %v930
      %v932 = vpop.xlane.xlu0 %931
      %v933 = vsel %vm916, %v929, 0.0
      %934 = vadd.xlane.f32.xlu0 %v933
      %v935 = vpop.xlane.xlu0 %934
      %v936 = vmul.f32 %v932, %v923
      %v937 = vmul.f32 %v935, %v923
      %v938 = vadd.f32 %v936, 1e-06
      %v939 = vadd.f32 %v937, 1e-06
      %v940 = vrsqrt.pop %v938
      %v941 = vrsqrt.pop %v939
      %v942 = vmul.f32 %v926, %v940
      %v943 = vmul.f32 %v927, %v941
      %v944 = vlaneseq
      %v945 = vshrl.u32 %v944, 7
      %v946 = vsub.s32 0, %v945
      %v947 = vrot.slane %v752, %v946
      %v948 = vmul.f32 %v942, %v947
      %v949 = vmul.f32 %v943, %v947
      %v950 = vlaneseq
      %v951 = vshrl.u32 %v950, 7
      %v952 = vsub.s32 1, %v951
      %v953 = vrot.slane %v752, %v952
      %v954 = vadd.f32 %v948, %v953
      %v955 = vadd.f32 %v949, %v953
      %v956 = vld [vmem:[%s6] sm:$0xf]
      %v957 = vld [vmem:[%s6 + $0x4] sm:$0xf]
      %v958 = vld [vmem:[%s6 + $0x8] sm:$0xf]
      %v959 = vld [vmem:[%s6 + $0xc] sm:$0xf]
      %v960 = vpack.c.bf16 %v955, %v954
      %v961 = vld [vmem:[%s7] sm:$0x1]
      %v963 = vlaneseq
      %v964 = vshrl.u32 %v963, 7
      %v965 = vsub.s32 0, %v964
      %v966 = vrot.slane %v961, %v965
      %v972 = vunpack.c.l.b16 %v956
      %v973 = vunpack.c.l.b16 %v957
      %v974 = vunpack.c.l.b16 %v958
      %v975 = vunpack.c.l.b16 %v959
      %v976 = vpack.c.b16 %v973, %v972
      %v977 = vpack.c.b16 %v975, %v974
      %v981 = vsel %vm916, %v960, 0
      %983 = vmatprep.subr.bf16.mxu0 0
      %984 = vmatpush1.bf16.msra.mxu0 0
      %985 = vmatprep.subr.bf16.mxu0 0
      %986 = vmatpush1.bf16.msra.mxu0 0
      %987 = vmatprep.subr.bf16.mxu0 0
      %988 = vmatpush1.bf16.msra.mxu0 0
      %989 = vmatprep.subr.bf16.mxu0 0
      %990 = vmatpush1.bf16.msra.mxu0 0
      %991 = vmatprep.subr.bf16.mxu0 0
      %992 = vmatpush1.bf16.msra.mxu0 0
      %993 = vmatprep.subr.bf16.mxu0 0
      %994 = vmatpush1.bf16.msra.mxu0 0
      %995 = vmatprep.subr.bf16.mxu0 0
      %996 = vmatpush1.bf16.msra.mxu0 %v977
      %997 = vmatprep.subr.bf16.mxu0 0
      %998 = vmatpush1.bf16.msra.mxu0 %v976
      %999 = vmatprep.subr.bf16.mxu0 0
      %1000 = vmatpush2.bf16.msra.mxu0 0
      %1001 = vmatprep.subr.bf16.mxu0 0
      %1002 = vmatpush2.bf16.msra.mxu0 0
      %1003 = vmatprep.subr.bf16.mxu0 0
      %1004 = vmatpush2.bf16.msra.mxu0 0
      %1005 = vmatprep.subr.bf16.mxu0 0
      %1006 = vmatpush2.bf16.msra.mxu0 0
      %1007 = vmatprep.subr.bf16.mxu0 0
      %1008 = vmatpush2.bf16.msra.mxu0 0
      %1009 = vmatprep.subr.bf16.mxu0 0
      %1010 = vmatpush2.bf16.msra.mxu0 0
      %1011 = vmatprep.subr.bf16.mxu0 0
      %1012 = vmatpush2.bf16.msra.mxu0 0
      %1013 = vmatprep.subr.bf16.mxu0 0
      %1014 = vmatpush2.bf16.msra.mxu0 0
      %1015 = vmatprep.mubr.bf16.mxu0 0
      %1016 = vmatmul.mubr.bf16.gmra.mxu0 %v981
      %v1017 = vpop.f32.mrf.mxu0
      %v1018 = vadd.f32 %v966, %v1017
      %v1019 = vpop.f32.mrf.mxu0
      %v1020 = vpop.f32.mrf.mxu0
      %v1021 = vadd.f32 %v966, %v1020
      %v1022 = vpop.f32.mrf.mxu0
      %1023 = vdwg.mxu0
      %v1024 = vpack.c.bf16 %v1021, %v1018
      %1026 = vrot.lane.b32.xlu0 %v1024, 96
      %v1027 = vpop.permute.xlu0 %1026
      %v1029 = vsel %vm916, %v1024, 0
      %v1032 = vsel %vm916, %v1027, 0
      %1034 = vmatprep.subr.bf16.mxu0 0
      %1035 = vmatpush1.bf16.xpose.msra.mxu0 0
      %1036 = vmatprep.subr.bf16.mxu0 0
      %1037 = vmatpush1.bf16.xpose.msra.mxu0 0
      %1038 = vmatprep.subr.bf16.mxu0 0
      %1039 = vmatpush1.bf16.xpose.msra.mxu0 0
      %1040 = vmatprep.subr.bf16.mxu0 0
      %1041 = vmatpush1.bf16.xpose.msra.mxu0 0
      %1042 = vmatprep.subr.bf16.mxu0 0
      %1043 = vmatpush1.bf16.xpose.msra.mxu0 0
      %1044 = vmatprep.subr.bf16.mxu0 0
      %1045 = vmatpush1.bf16.xpose.msra.mxu0 0
      %1046 = vmatprep.subr.bf16.mxu0 0
      %1047 = vmatpush1.bf16.xpose.msra.mxu0 0
      %1048 = vmatprep.subr.bf16.mxu0 0
      %1049 = vmatpush1.bf16.xpose.msra.mxu0 %v1032
      %1050 = vmatprep.subr.bf16.mxu0 0
      %1051 = vmatpush2.bf16.xpose.msra.mxu0 0
      %1052 = vmatprep.subr.bf16.mxu0 0
      %1053 = vmatpush2.bf16.xpose.msra.mxu0 0
      %1054 = vmatprep.subr.bf16.mxu0 0
      %1055 = vmatpush2.bf16.xpose.msra.mxu0 0
      %1056 = vmatprep.subr.bf16.mxu0 0
      %1057 = vmatpush2.bf16.xpose.msra.mxu0 0
      %1058 = vmatprep.subr.bf16.mxu0 0
      %1059 = vmatpush2.bf16.xpose.msra.mxu0 0
      %1060 = vmatprep.subr.bf16.mxu0 0
      %1061 = vmatpush2.bf16.xpose.msra.mxu0 0
      %1062 = vmatprep.subr.bf16.mxu0 0
      %1063 = vmatpush2.bf16.xpose.msra.mxu0 0
      %1064 = vmatprep.subr.bf16.mxu0 0
      %1065 = vmatpush2.bf16.xpose.msra.mxu0 0
      %1066 = vmatprep.mubr.bf16.mxu0 0
      %1067 = vmatmul.mubr.bf16.gmra.mxu0 %v1029
      %v1068 = vpop.f32.mrf.mxu0
      %v1069 = vadd.f32 0.0, %v1068
      %v1070 = vpop.f32.mrf.mxu0
      %v1071 = vpop.f32.mrf.mxu0
      %v1072 = vadd.f32 0.0, %v1071
      %v1073 = vpop.f32.mrf.mxu0
      %1074 = vdwg.mxu0
      %v1075 = vmul.f32 %v1069, 0.17677669
      %v1076 = vmul.f32 %v1072, 0.17677669
      %vm1077 = vcmask 130048
      %v1078 = vsel %vm1077, %v1075, -inf
      %1079 = vmax.xlane.f32.xlu0 %v1078
      %v1080 = vpop.xlane.xlu0 %1079
      %v1081 = vsel %vm1077, %v1076, -inf
      %1082 = vmax.xlane.f32.xlu0 %v1081
      %v1083 = vpop.xlane.xlu0 %1082
      %v1084 = vsub.f32 %v1075, %v1080
      %v1085 = vsub.f32 %v1076, %v1083
      %v1086 = vmul.f32 %v1084, 1.442695
      %v1087 = vpow.pop %v1086
      %v1088 = vmul.f32 %v1085, 1.442695
      %v1089 = vpow.pop %v1088
      %v1090 = vsel %vm1077, %v1087, 0.0
      %1091 = vadd.xlane.f32.xlu0 %v1090
      %v1092 = vpop.xlane.xlu0 %1091
      %v1093 = vsel %vm1077, %v1089, 0.0
      %1094 = vadd.xlane.f32.xlu0 %v1093
      %v1095 = vpop.xlane.xlu0 %1094
      %v1096 = vrcp.pop %v1092
      %v1097 = vrcp.pop %v1095
      %v1098 = vmul.f32 %v1087, %v1096
      %v1099 = vmul.f32 %v1089, %v1097
      %v1100 = vpack.c.bf16 %v1099, %v1098
      %1101 = vrot.lane.b32.xlu0 %v1024, 64
      %v1102 = vpop.permute.xlu0 %1101
      %v1105 = vsel %vm1077, %v1100, 0
      %1107 = vmatprep.subr.bf16.mxu0 0
      %1108 = vmatpush1.bf16.msra.mxu0 0
      %1109 = vmatprep.subr.bf16.mxu0 0
      %1110 = vmatpush1.bf16.msra.mxu0 0
      %1111 = vmatprep.subr.bf16.mxu0 0
      %1112 = vmatpush1.bf16.msra.mxu0 0
      %1113 = vmatprep.subr.bf16.mxu0 0
      %1114 = vmatpush1.bf16.msra.mxu0 0
      %1115 = vmatprep.subr.bf16.mxu0 0
      %1116 = vmatpush1.bf16.msra.mxu0 0
      %1117 = vmatprep.subr.bf16.mxu0 0
      %1118 = vmatpush1.bf16.msra.mxu0 0
      %1119 = vmatprep.subr.bf16.mxu0 0
      %1120 = vmatpush1.bf16.msra.mxu0 0
      %1121 = vmatprep.subr.bf16.mxu0 0
      %1122 = vmatpush1.bf16.msra.mxu0 %v1102
      %1123 = vmatprep.subr.bf16.mxu0 0
      %1124 = vmatpush2.bf16.msra.mxu0 0
      %1125 = vmatprep.subr.bf16.mxu0 0
      %1126 = vmatpush2.bf16.msra.mxu0 0
      %1127 = vmatprep.subr.bf16.mxu0 0
      %1128 = vmatpush2.bf16.msra.mxu0 0
      %1129 = vmatprep.subr.bf16.mxu0 0
      %1130 = vmatpush2.bf16.msra.mxu0 0
      %1131 = vmatprep.subr.bf16.mxu0 0
      %1132 = vmatpush2.bf16.msra.mxu0 0
      %1133 = vmatprep.subr.bf16.mxu0 0
      %1134 = vmatpush2.bf16.msra.mxu0 0
      %1135 = vmatprep.subr.bf16.mxu0 0
      %1136 = vmatpush2.bf16.msra.mxu0 0
      %1137 = vmatprep.subr.bf16.mxu0 0
      %1138 = vmatpush2.bf16.msra.mxu0 0
      %1139 = vmatprep.mubr.bf16.mxu0 0
      %1140 = vmatmul.mubr.bf16.gmra.mxu0 %v1105
      %v1141 = vpop.f32.mrf.mxu0
      %v1142 = vadd.f32 0.0, %v1141
      %v1143 = vpop.f32.mrf.mxu0
      %v1144 = vpop.f32.mrf.mxu0
      %v1145 = vadd.f32 0.0, %v1144
      %v1146 = vpop.f32.mrf.mxu0
      %1147 = vdwg.mxu0
      %v1148 = vld [vmem:[%s8] sm:$0xf]
      %v1149 = vld [vmem:[%s8 + $0x4] sm:$0xf]
      %v1150 = vld [vmem:[%s8 + $0x8] sm:$0xf]
      %v1151 = vld [vmem:[%s8 + $0xc] sm:$0xf]
      %v1152 = vpack.c.bf16 %v1145, %v1142
      %v1153 = vld [vmem:[%s9] sm:$0x1]
      %v1155 = vlaneseq
      %v1156 = vshrl.u32 %v1155, 7
      %v1157 = vsub.s32 0, %v1156
      %v1158 = vrot.slane %v1153, %v1157
      %v1164 = vunpack.c.l.b16 %v1148
      %v1165 = vunpack.c.l.b16 %v1149
      %v1166 = vunpack.c.l.b16 %v1150
      %v1167 = vunpack.c.l.b16 %v1151
      %v1168 = vpack.c.b16 %v1165, %v1164
      %v1169 = vpack.c.b16 %v1167, %v1166
      %v1173 = vsel %vm916, %v1152, 0
      %1175 = vmatprep.subr.bf16.mxu0 0
      %1176 = vmatpush1.bf16.msra.mxu0 0
      %1177 = vmatprep.subr.bf16.mxu0 0
      %1178 = vmatpush1.bf16.msra.mxu0 0
      %1179 = vmatprep.subr.bf16.mxu0 0
      %1180 = vmatpush1.bf16.msra.mxu0 0
      %1181 = vmatprep.subr.bf16.mxu0 0
      %1182 = vmatpush1.bf16.msra.mxu0 0
      %1183 = vmatprep.subr.bf16.mxu0 0
      %1184 = vmatpush1.bf16.msra.mxu0 0
      %1185 = vmatprep.subr.bf16.mxu0 0
      %1186 = vmatpush1.bf16.msra.mxu0 0
      %1187 = vmatprep.subr.bf16.mxu0 0
      %1188 = vmatpush1.bf16.msra.mxu0 %v1169
      %1189 = vmatprep.subr.bf16.mxu0 0
      %1190 = vmatpush1.bf16.msra.mxu0 %v1168
      %1191 = vmatprep.subr.bf16.mxu0 0
      %1192 = vmatpush2.bf16.msra.mxu0 0
      %1193 = vmatprep.subr.bf16.mxu0 0
      %1194 = vmatpush2.bf16.msra.mxu0 0
      %1195 = vmatprep.subr.bf16.mxu0 0
      %1196 = vmatpush2.bf16.msra.mxu0 0
      %1197 = vmatprep.subr.bf16.mxu0 0
      %1198 = vmatpush2.bf16.msra.mxu0 0
      %1199 = vmatprep.subr.bf16.mxu0 0
      %1200 = vmatpush2.bf16.msra.mxu0 0
      %1201 = vmatprep.subr.bf16.mxu0 0
      %1202 = vmatpush2.bf16.msra.mxu0 0
      %1203 = vmatprep.subr.bf16.mxu0 0
      %1204 = vmatpush2.bf16.msra.mxu0 0
      %1205 = vmatprep.subr.bf16.mxu0 0
      %1206 = vmatpush2.bf16.msra.mxu0 0
      %1207 = vmatprep.mubr.bf16.mxu0 0
      %1208 = vmatmul.mubr.bf16.gmra.mxu0 %v1173
      %v1209 = vpop.f32.mrf.mxu0
      %v1210 = vadd.f32 %v1158, %v1209
      %v1211 = vpop.f32.mrf.mxu0
      %v1212 = vpop.f32.mrf.mxu0
      %v1213 = vadd.f32 %v1158, %v1212
      %v1214 = vpop.f32.mrf.mxu0
      %1215 = vdwg.mxu0
      %v1216 = vadd.f32 %v914, %v1210
      %v1217 = vadd.f32 %v915, %v1213
      %v1218 = vsel %vm916, %v1216, 0.0
      %1219 = vadd.xlane.f32.xlu0 %v1218
      %v1220 = vpop.xlane.xlu0 %1219
      %v1221 = vsel %vm916, %v1217, 0.0
      %1222 = vadd.xlane.f32.xlu0 %v1221
      %v1223 = vpop.xlane.xlu0 %1222
      %v1224 = vmul.f32 %v1220, %v923
      %v1225 = vmul.f32 %v1223, %v923
      %v1226 = vsub.f32 %v1216, %v1224
      %v1227 = vsub.f32 %v1217, %v1225
      %v1228 = vmul.f32 %v1226, %v1226
      %v1229 = vmul.f32 %v1227, %v1227
      %v1230 = vsel %vm916, %v1228, 0.0
      %1231 = vadd.xlane.f32.xlu0 %v1230
      %v1232 = vpop.xlane.xlu0 %1231
      %v1233 = vsel %vm916, %v1229, 0.0
      %1234 = vadd.xlane.f32.xlu0 %v1233
      %v1235 = vpop.xlane.xlu0 %1234
      %v1236 = vmul.f32 %v1232, %v923
      %v1237 = vmul.f32 %v1235, %v923
      %v1238 = vadd.f32 %v1236, 1e-06
      %v1239 = vadd.f32 %v1237, 1e-06
      %v1240 = vrsqrt.pop %v1238
      %v1241 = vrsqrt.pop %v1239
      %v1242 = vmul.f32 %v1226, %v1240
      %v1243 = vmul.f32 %v1227, %v1241
      %v1244 = vlaneseq
      %v1245 = vshrl.u32 %v1244, 7
      %v1246 = vsub.s32 2, %v1245
      %v1247 = vrot.slane %v752, %v1246
      %v1248 = vmul.f32 %v1242, %v1247
      %v1249 = vmul.f32 %v1243, %v1247
      %v1250 = vlaneseq
      %v1251 = vshrl.u32 %v1250, 7
      %v1252 = vsub.s32 3, %v1251
      %v1253 = vrot.slane %v752, %v1252
      %v1254 = vadd.f32 %v1248, %v1253
      %v1255 = vadd.f32 %v1249, %v1253
      %v1256 = vld [vmem:[%s10] sm:$0xf]
      %v1257 = vld [vmem:[%s10 + $0x4] sm:$0xf]
      %v1258 = vld [vmem:[%s10 + $0x8] sm:$0xf]
      %v1259 = vld [vmem:[%s10 + $0xc] sm:$0xf]
      %v1260 = vpack.c.bf16 %v1255, %v1254
      %v1261 = vld [vmem:[%s11] sm:$0x1]
      %v1263 = vlaneseq
      %v1264 = vshrl.u32 %v1263, 7
      %v1265 = vsub.s32 0, %v1264
      %v1266 = vrot.slane %v1261, %v1265
      %v1272 = vunpack.c.l.b16 %v1256
      %v1273 = vunpack.c.l.b16 %v1257
      %v1274 = vunpack.c.l.b16 %v1258
      %v1275 = vunpack.c.l.b16 %v1259
      %v1276 = vpack.c.b16 %v1273, %v1272
      %v1277 = vpack.c.b16 %v1275, %v1274
      %v1281 = vsel %vm916, %v1260, 0
      %1283 = vmatprep.subr.bf16.mxu0 0
      %1284 = vmatpush1.bf16.msra.mxu0 0
      %1285 = vmatprep.subr.bf16.mxu0 0
      %1286 = vmatpush1.bf16.msra.mxu0 0
      %1287 = vmatprep.subr.bf16.mxu0 0
      %1288 = vmatpush1.bf16.msra.mxu0 0
      %1289 = vmatprep.subr.bf16.mxu0 0
      %1290 = vmatpush1.bf16.msra.mxu0 0
      %1291 = vmatprep.subr.bf16.mxu0 0
      %1292 = vmatpush1.bf16.msra.mxu0 0
      %1293 = vmatprep.subr.bf16.mxu0 0
      %1294 = vmatpush1.bf16.msra.mxu0 0
      %1295 = vmatprep.subr.bf16.mxu0 0
      %1296 = vmatpush1.bf16.msra.mxu0 %v1277
      %1297 = vmatprep.subr.bf16.mxu0 0
      %1298 = vmatpush1.bf16.msra.mxu0 %v1276
      %1299 = vmatprep.subr.bf16.mxu0 0
      %1300 = vmatpush2.bf16.msra.mxu0 0
      %1301 = vmatprep.subr.bf16.mxu0 0
      %1302 = vmatpush2.bf16.msra.mxu0 0
      %1303 = vmatprep.subr.bf16.mxu0 0
      %1304 = vmatpush2.bf16.msra.mxu0 0
      %1305 = vmatprep.subr.bf16.mxu0 0
      %1306 = vmatpush2.bf16.msra.mxu0 0
      %1307 = vmatprep.subr.bf16.mxu0 0
      %1308 = vmatpush2.bf16.msra.mxu0 0
      %1309 = vmatprep.subr.bf16.mxu0 0
      %1310 = vmatpush2.bf16.msra.mxu0 0
      %1311 = vmatprep.subr.bf16.mxu0 0
      %1312 = vmatpush2.bf16.msra.mxu0 0
      %1313 = vmatprep.subr.bf16.mxu0 0
      %1314 = vmatpush2.bf16.msra.mxu0 0
      %1315 = vmatprep.mubr.bf16.mxu0 0
      %1316 = vmatmul.mubr.bf16.gmra.mxu0 %v1281
      %v1317 = vpop.f32.mrf.mxu0
      %v1318 = vadd.f32 %v1266, %v1317
      %v1319 = vpop.f32.mrf.mxu0
      %v1320 = vpop.f32.mrf.mxu0
      %v1321 = vadd.f32 %v1266, %v1320
      %v1322 = vpop.f32.mrf.mxu0
      %1323 = vdwg.mxu0
      %v1324 = vmul.f32 %v1318, %v1318
      %v1325 = vmul.f32 %v1321, %v1321
      %v1326 = vmul.f32 %v1318, %v1324
      %v1327 = vmul.f32 %v1321, %v1325
      %v1328 = vmul.f32 %v1326, 0.044715
      %v1329 = vmul.f32 %v1327, 0.044715
      %v1330 = vadd.f32 %v1318, %v1328
      %v1331 = vadd.f32 %v1321, %v1329
      %v1332 = vmul.f32 %v1330, 0.7978846
      %v1333 = vmul.f32 %v1331, 0.7978846
      %v1334 = vtanh.pop %v1332
      %v1335 = vtanh.pop %v1333
      %v1336 = vadd.f32 %v1334, 1.0
      %v1337 = vadd.f32 %v1335, 1.0
      %v1338 = vmul.f32 %v1336, 0.5
      %v1339 = vmul.f32 %v1337, 0.5
      %v1340 = vmul.f32 %v1318, %v1338
      %v1341 = vmul.f32 %v1321, %v1339
      %v1342 = vld [vmem:[%s12] sm:$0xf]
      %v1343 = vld [vmem:[%s12 + $0x4] sm:$0xf]
      %v1344 = vld [vmem:[%s12 + $0x8] sm:$0xf]
      %v1345 = vld [vmem:[%s12 + $0xc] sm:$0xf]
      %v1346 = vld [vmem:[%s12 + $0x10] sm:$0xf]
      %v1347 = vld [vmem:[%s12 + $0x14] sm:$0xf]
      %v1348 = vld [vmem:[%s12 + $0x18] sm:$0xf]
      %v1349 = vld [vmem:[%s12 + $0x1c] sm:$0xf]
      %v1350 = vld [vmem:[%s12 + $0x20] sm:$0xf]
      %v1351 = vld [vmem:[%s12 + $0x24] sm:$0xf]
      %v1352 = vld [vmem:[%s12 + $0x28] sm:$0xf]
      %v1353 = vld [vmem:[%s12 + $0x2c] sm:$0xf]
      %v1354 = vld [vmem:[%s12 + $0x30] sm:$0xf]
      %v1355 = vld [vmem:[%s12 + $0x34] sm:$0xf]
      %v1356 = vld [vmem:[%s12 + $0x38] sm:$0xf]
      %v1357 = vld [vmem:[%s12 + $0x3c] sm:$0xf]
      %v1358 = vpack.c.bf16 %v1341, %v1340
      %v1375 = vunpack.c.l.b16 %v1342
      %v1376 = vunpack.c.l.b16 %v1343
      %v1377 = vunpack.c.l.b16 %v1344
      %v1378 = vunpack.c.l.b16 %v1345
      %v1379 = vunpack.c.l.b16 %v1346
      %v1380 = vunpack.c.l.b16 %v1347
      %v1381 = vunpack.c.l.b16 %v1348
      %v1382 = vunpack.c.l.b16 %v1349
      %v1383 = vunpack.c.l.b16 %v1350
      %v1384 = vunpack.c.l.b16 %v1351
      %v1385 = vunpack.c.l.b16 %v1352
      %v1386 = vunpack.c.l.b16 %v1353
      %v1387 = vunpack.c.l.b16 %v1354
      %v1388 = vunpack.c.l.b16 %v1355
      %v1389 = vunpack.c.l.b16 %v1356
      %v1390 = vunpack.c.l.b16 %v1357
      %v1391 = vpack.c.b16 %v1376, %v1375
      %v1392 = vpack.c.b16 %v1378, %v1377
      %v1393 = vpack.c.b16 %v1380, %v1379
      %v1394 = vpack.c.b16 %v1382, %v1381
      %v1395 = vpack.c.b16 %v1384, %v1383
      %v1396 = vpack.c.b16 %v1386, %v1385
      %v1397 = vpack.c.b16 %v1388, %v1387
      %v1398 = vpack.c.b16 %v1390, %v1389
      %1407 = vmatprep.subr.bf16.mxu0 0
      %1408 = vmatpush1.bf16.msra.mxu0 %v1398
      %1409 = vmatprep.subr.bf16.mxu0 0
      %1410 = vmatpush1.bf16.msra.mxu0 %v1397
      %1411 = vmatprep.subr.bf16.mxu0 0
      %1412 = vmatpush1.bf16.msra.mxu0 %v1396
      %1413 = vmatprep.subr.bf16.mxu0 0
      %1414 = vmatpush1.bf16.msra.mxu0 %v1395
      %1415 = vmatprep.subr.bf16.mxu0 0
      %1416 = vmatpush1.bf16.msra.mxu0 %v1394
      %1417 = vmatprep.subr.bf16.mxu0 0
      %1418 = vmatpush1.bf16.msra.mxu0 %v1393
      %1419 = vmatprep.subr.bf16.mxu0 0
      %1420 = vmatpush1.bf16.msra.mxu0 %v1392
      %1421 = vmatprep.subr.bf16.mxu0 0
      %1422 = vmatpush1.bf16.msra.mxu0 %v1391
      %1423 = vmatprep.subr.bf16.mxu0 0
      %1424 = vmatpush2.bf16.msra.mxu0 0
      %1425 = vmatprep.subr.bf16.mxu0 0
      %1426 = vmatpush2.bf16.msra.mxu0 0
      %1427 = vmatprep.subr.bf16.mxu0 0
      %1428 = vmatpush2.bf16.msra.mxu0 0
      %1429 = vmatprep.subr.bf16.mxu0 0
      %1430 = vmatpush2.bf16.msra.mxu0 0
      %1431 = vmatprep.subr.bf16.mxu0 0
      %1432 = vmatpush2.bf16.msra.mxu0 0
      %1433 = vmatprep.subr.bf16.mxu0 0
      %1434 = vmatpush2.bf16.msra.mxu0 0
      %1435 = vmatprep.subr.bf16.mxu0 0
      %1436 = vmatpush2.bf16.msra.mxu0 0
      %1437 = vmatprep.subr.bf16.mxu0 0
      %1438 = vmatpush2.bf16.msra.mxu0 0
      %1439 = vmatprep.mubr.bf16.mxu0 0
      %1440 = vmatmul.mubr.bf16.gmra.mxu0 %v1358
      %v1441 = vpop.f32.mrf.mxu0
      %v1442 = vadd.f32 0.0, %v1441
      %v1443 = vpop.f32.mrf.mxu0
      %v1444 = vpop.f32.mrf.mxu0
      %v1445 = vadd.f32 0.0, %v1444
      %v1446 = vpop.f32.mrf.mxu0
      %1447 = vdwg.mxu0
      %v1448 = vadd.f32 %v1216, %v1442
      %v1449 = vadd.f32 %v1217, %v1445
      %v1450 = vld [vmem:[%s13] sm:$0x1]
      %v1452 = vlaneseq
      %v1453 = vshrl.u32 %v1452, 7
      %v1454 = vsub.s32 0, %v1453
      %v1455 = vrot.slane %v1450, %v1454
      %v1457 = vadd.f32 %v1448, %v1455
      %v1458 = vadd.f32 %v1449, %v1455
      %v1459 = vld [vmem:[%s22] sm:$0x1]
      %v1461 = vlaneseq
      %v1462 = vshrl.u32 %v1461, 7
      %v1463 = vsub.s32 0, %v1462
      %v1464 = vrot.slane %v1459, %v1463
      %v1466 = vadd.f32 %v1457, %v1464
      %v1467 = vadd.f32 %v1458, %v1464
      %v1468 = vld [vmem:[%s747] sm:$0x7]
      %v1469 = vld [vmem:[%s14] sm:$0xf]
      %v1470 = vld [vmem:[%s14 + $0x4] sm:$0xf]
      %v1471 = vld [vmem:[%s14 + $0x8] sm:$0xf]
      %v1472 = vld [vmem:[%s14 + $0xc] sm:$0xf]
      %v1473 = vpack.c.bf16 %v1468, %v1468
      %v1474 = vld [vmem:[%s15] sm:$0x1]
      %v1476 = vlaneseq
      %v1477 = vshrl.u32 %v1476, 7
      %v1478 = vsub.s32 0, %v1477
      %v1479 = vrot.slane %v1474, %v1478
      %v1485 = vunpack.c.l.b16 %v1469
      %v1486 = vunpack.c.l.b16 %v1470
      %v1487 = vunpack.c.l.b16 %v1471
      %v1488 = vunpack.c.l.b16 %v1472
      %v1489 = vpack.c.b16 %v1486, %v1485
      %v1490 = vpack.c.b16 %v1488, %v1487
      %v1494 = vsel %vm916, %v1473, 0
      %1496 = vmatprep.subr.bf16.mxu0 0
      %1497 = vmatpush1.bf16.msra.mxu0 0
      %1498 = vmatprep.subr.bf16.mxu0 0
      %1499 = vmatpush1.bf16.msra.mxu0 0
      %1500 = vmatprep.subr.bf16.mxu0 0
      %1501 = vmatpush1.bf16.msra.mxu0 0
      %1502 = vmatprep.subr.bf16.mxu0 0
      %1503 = vmatpush1.bf16.msra.mxu0 0
      %1504 = vmatprep.subr.bf16.mxu0 0
      %1505 = vmatpush1.bf16.msra.mxu0 0
      %1506 = vmatprep.subr.bf16.mxu0 0
      %1507 = vmatpush1.bf16.msra.mxu0 0
      %1508 = vmatprep.subr.bf16.mxu0 0
      %1509 = vmatpush1.bf16.msra.mxu0 %v1490
      %1510 = vmatprep.subr.bf16.mxu0 0
      %1511 = vmatpush1.bf16.msra.mxu0 %v1489
      %1512 = vmatprep.subr.bf16.mxu0 0
      %1513 = vmatpush2.bf16.msra.mxu0 0
      %1514 = vmatprep.subr.bf16.mxu0 0
      %1515 = vmatpush2.bf16.msra.mxu0 0
      %1516 = vmatprep.subr.bf16.mxu0 0
      %1517 = vmatpush2.bf16.msra.mxu0 0
      %1518 = vmatprep.subr.bf16.mxu0 0
      %1519 = vmatpush2.bf16.msra.mxu0 0
      %1520 = vmatprep.subr.bf16.mxu0 0
      %1521 = vmatpush2.bf16.msra.mxu0 0
      %1522 = vmatprep.subr.bf16.mxu0 0
      %1523 = vmatpush2.bf16.msra.mxu0 0
      %1524 = vmatprep.subr.bf16.mxu0 0
      %1525 = vmatpush2.bf16.msra.mxu0 0
      %1526 = vmatprep.subr.bf16.mxu0 0
      %1527 = vmatpush2.bf16.msra.mxu0 0
      %1528 = vmatprep.mubr.bf16.mxu0 0
      %1529 = vmatmul.mubr.bf16.gmra.mxu0 %v1494
      %v1530 = vpop.f32.mrf.mxu0
      %v1531 = vadd.f32 %v1479, %v1530
      %v1532 = vpop.f32.mrf.mxu0
      %v1533 = vpop.f32.mrf.mxu0
      %v1534 = vpop.f32.mrf.mxu0
      %1535 = vdwg.mxu0
      %v1536 = vld [vmem:[%s23] sm:$0xff]
      %v1537 = vld [vmem:[%s23 + $0x8] sm:$0xff]
      %v1538 = vadd.f32 %v1466, %v1536
      %v1539 = vadd.f32 %v1467, %v1537
      %v1540 = vld [vmem:[%s16] sm:$0xf]
      %v1541 = vld [vmem:[%s16 + $0x4] sm:$0xf]
      %v1542 = vld [vmem:[%s16 + $0x8] sm:$0xf]
      %v1543 = vld [vmem:[%s16 + $0xc] sm:$0xf]
      %v1544 = vpack.c.bf16 %v1539, %v1538
      %v1545 = vld [vmem:[%s17] sm:$0x1]
      %v1547 = vlaneseq
      %v1548 = vshrl.u32 %v1547, 7
      %v1549 = vsub.s32 0, %v1548
      %v1550 = vrot.slane %v1545, %v1549
      %v1556 = vunpack.c.l.b16 %v1540
      %v1557 = vunpack.c.l.b16 %v1541
      %v1558 = vunpack.c.l.b16 %v1542
      %v1559 = vunpack.c.l.b16 %v1543
      %v1560 = vpack.c.b16 %v1557, %v1556
      %v1561 = vpack.c.b16 %v1559, %v1558
      %v1565 = vsel %vm916, %v1544, 0
      %1567 = vmatprep.subr.bf16.mxu0 0
      %1568 = vmatpush1.bf16.msra.mxu0 0
      %1569 = vmatprep.subr.bf16.mxu0 0
      %1570 = vmatpush1.bf16.msra.mxu0 0
      %1571 = vmatprep.subr.bf16.mxu0 0
      %1572 = vmatpush1.bf16.msra.mxu0 0
      %1573 = vmatprep.subr.bf16.mxu0 0
      %1574 = vmatpush1.bf16.msra.mxu0 0
      %1575 = vmatprep.subr.bf16.mxu0 0
      %1576 = vmatpush1.bf16.msra.mxu0 0
      %1577 = vmatprep.subr.bf16.mxu0 0
      %1578 = vmatpush1.bf16.msra.mxu0 0
      %1579 = vmatprep.subr.bf16.mxu0 0
      %1580 = vmatpush1.bf16.msra.mxu0 %v1561
      %1581 = vmatprep.subr.bf16.mxu0 0
      %1582 = vmatpush1.bf16.msra.mxu0 %v1560
      %1583 = vmatprep.subr.bf16.mxu0 0
      %1584 = vmatpush2.bf16.msra.mxu0 0
      %1585 = vmatprep.subr.bf16.mxu0 0
      %1586 = vmatpush2.bf16.msra.mxu0 0
      %1587 = vmatprep.subr.bf16.mxu0 0
      %1588 = vmatpush2.bf16.msra.mxu0 0
      %1589 = vmatprep.subr.bf16.mxu0 0
      %1590 = vmatpush2.bf16.msra.mxu0 0
      %1591 = vmatprep.subr.bf16.mxu0 0
      %1592 = vmatpush2.bf16.msra.mxu0 0
      %1593 = vmatprep.subr.bf16.mxu0 0
      %1594 = vmatpush2.bf16.msra.mxu0 0
      %1595 = vmatprep.subr.bf16.mxu0 0
      %1596 = vmatpush2.bf16.msra.mxu0 0
      %1597 = vmatprep.subr.bf16.mxu0 0
      %1598 = vmatpush2.bf16.msra.mxu0 0
      %1599 = vmatprep.mubr.bf16.mxu0 0
      %1600 = vmatmul.mubr.bf16.gmra.mxu0 %v1565
      %v1601 = vpop.f32.mrf.mxu0
      %v1602 = vadd.f32 %v1550, %v1601
      %v1603 = vpop.f32.mrf.mxu0
      %v1604 = vpop.f32.mrf.mxu0
      %v1605 = vadd.f32 %v1550, %v1604
      %v1606 = vpop.f32.mrf.mxu0
      %1607 = vdwg.mxu0
      %v1608 = vld [vmem:[%s18] sm:$0xf]
      %v1609 = vld [vmem:[%s18 + $0x4] sm:$0xf]
      %v1610 = vld [vmem:[%s18 + $0x8] sm:$0xf]
      %v1611 = vld [vmem:[%s18 + $0xc] sm:$0xf]
      %v1612 = vpack.c.bf16 %v1467, %v1466
      %v1613 = vld [vmem:[%s19] sm:$0x1]
      %v1615 = vlaneseq
      %v1616 = vshrl.u32 %v1615, 7
      %v1617 = vsub.s32 0, %v1616
      %v1618 = vrot.slane %v1613, %v1617
      %v1624 = vunpack.c.l.b16 %v1608
      %v1625 = vunpack.c.l.b16 %v1609
      %v1626 = vunpack.c.l.b16 %v1610
      %v1627 = vunpack.c.l.b16 %v1611
      %v1628 = vpack.c.b16 %v1625, %v1624
      %v1629 = vpack.c.b16 %v1627, %v1626
      %v1633 = vsel %vm916, %v1612, 0
      %1635 = vmatprep.subr.bf16.mxu0 0
      %1636 = vmatpush1.bf16.msra.mxu0 0
      %1637 = vmatprep.subr.bf16.mxu0 0
      %1638 = vmatpush1.bf16.msra.mxu0 0
      %1639 = vmatprep.subr.bf16.mxu0 0
      %1640 = vmatpush1.bf16.msra.mxu0 0
      %1641 = vmatprep.subr.bf16.mxu0 0
      %1642 = vmatpush1.bf16.msra.mxu0 0
      %1643 = vmatprep.subr.bf16.mxu0 0
      %1644 = vmatpush1.bf16.msra.mxu0 0
      %1645 = vmatprep.subr.bf16.mxu0 0
      %1646 = vmatpush1.bf16.msra.mxu0 0
      %1647 = vmatprep.subr.bf16.mxu0 0
      %1648 = vmatpush1.bf16.msra.mxu0 %v1629
      %1649 = vmatprep.subr.bf16.mxu0 0
      %1650 = vmatpush1.bf16.msra.mxu0 %v1628
      %1651 = vmatprep.subr.bf16.mxu0 0
      %1652 = vmatpush2.bf16.msra.mxu0 0
      %1653 = vmatprep.subr.bf16.mxu0 0
      %1654 = vmatpush2.bf16.msra.mxu0 0
      %1655 = vmatprep.subr.bf16.mxu0 0
      %1656 = vmatpush2.bf16.msra.mxu0 0
      %1657 = vmatprep.subr.bf16.mxu0 0
      %1658 = vmatpush2.bf16.msra.mxu0 0
      %1659 = vmatprep.subr.bf16.mxu0 0
      %1660 = vmatpush2.bf16.msra.mxu0 0
      %1661 = vmatprep.subr.bf16.mxu0 0
      %1662 = vmatpush2.bf16.msra.mxu0 0
      %1663 = vmatprep.subr.bf16.mxu0 0
      %1664 = vmatpush2.bf16.msra.mxu0 0
      %1665 = vmatprep.subr.bf16.mxu0 0
      %1666 = vmatpush2.bf16.msra.mxu0 0
      %1667 = vmatprep.mubr.bf16.mxu0 0
      %1668 = vmatmul.mubr.bf16.gmra.mxu0 %v1633
      %v1669 = vpop.f32.mrf.mxu0
      %v1670 = vadd.f32 %v1618, %v1669
      %v1671 = vpop.f32.mrf.mxu0
      %v1672 = vpop.f32.mrf.mxu0
      %v1673 = vadd.f32 %v1618, %v1672
      %v1674 = vpop.f32.mrf.mxu0
      %1675 = vdwg.mxu0
      %v1676 = vpack.c.bf16 %v1531, %v1531
      %v1677 = vpack.c.bf16 %v1605, %v1602
      %v1679 = vsel %vm916, %v1676, 0
      %v1682 = vsel %vm916, %v1677, 0
      %1684 = vmatprep.subr.bf16.mxu0 0
      %1685 = vmatpush1.bf16.xpose.msra.mxu0 0
      %1686 = vmatprep.subr.bf16.mxu0 0
      %1687 = vmatpush1.bf16.xpose.msra.mxu0 0
      %1688 = vmatprep.subr.bf16.mxu0 0
      %1689 = vmatpush1.bf16.xpose.msra.mxu0 0
      %1690 = vmatprep.subr.bf16.mxu0 0
      %1691 = vmatpush1.bf16.xpose.msra.mxu0 0
      %1692 = vmatprep.subr.bf16.mxu0 0
      %1693 = vmatpush1.bf16.xpose.msra.mxu0 0
      %1694 = vmatprep.subr.bf16.mxu0 0
      %1695 = vmatpush1.bf16.xpose.msra.mxu0 0
      %1696 = vmatprep.subr.bf16.mxu0 0
      %1697 = vmatpush1.bf16.xpose.msra.mxu0 0
      %1698 = vmatprep.subr.bf16.mxu0 0
      %1699 = vmatpush1.bf16.xpose.msra.mxu0 %v1682
      %1700 = vmatprep.subr.bf16.mxu0 0
      %1701 = vmatpush2.bf16.xpose.msra.mxu0 0
      %1702 = vmatprep.subr.bf16.mxu0 0
      %1703 = vmatpush2.bf16.xpose.msra.mxu0 0
      %1704 = vmatprep.subr.bf16.mxu0 0
      %1705 = vmatpush2.bf16.xpose.msra.mxu0 0
      %1706 = vmatprep.subr.bf16.mxu0 0
      %1707 = vmatpush2.bf16.xpose.msra.mxu0 0
      %1708 = vmatprep.subr.bf16.mxu0 0
      %1709 = vmatpush2.bf16.xpose.msra.mxu0 0
      %1710 = vmatprep.subr.bf16.mxu0 0
      %1711 = vmatpush2.bf16.xpose.msra.mxu0 0
      %1712 = vmatprep.subr.bf16.mxu0 0
      %1713 = vmatpush2.bf16.xpose.msra.mxu0 0
      %1714 = vmatprep.subr.bf16.mxu0 0
      %1715 = vmatpush2.bf16.xpose.msra.mxu0 0
      %1716 = vmatprep.mubr.bf16.mxu0 0
      %1717 = vmatmul.mubr.bf16.gmra.mxu0 %v1679
      %v1718 = vpop.f32.mrf.mxu0
      %v1719 = vadd.f32 0.0, %v1718
      %v1720 = vpop.f32.mrf.mxu0
      %v1721 = vpop.f32.mrf.mxu0
      %v1722 = vpop.f32.mrf.mxu0
      %1723 = vdwg.mxu0
      %v1724 = vmul.f32 %v1719, 0.17677669
      %vm1725 = vcmask 124928
      %v1726 = vsel %vm1725, %v1724, -inf
      %1727 = vmax.xlane.f32.xlu0 %v1726
      %v1728 = vpop.xlane.xlu0 %1727
      %v1729 = vsub.f32 %v1724, %v1728
      %v1730 = vmul.f32 %v1729, 1.442695
      %v1731 = vpow.pop %v1730
      %v1732 = vsel %vm1725, %v1731, 0.0
      %1733 = vadd.xlane.f32.xlu0 %v1732
      %v1734 = vpop.xlane.xlu0 %1733
      %v1735 = vrcp.pop %v1734
      %v1736 = vmul.f32 %v1731, %v1735
      %v1737 = vpack.c.bf16 %v1736, %v1736
      %v1738 = vpack.c.bf16 %v1673, %v1670
      %v1740 = vsel %vm1077, %v1737, 0
      %1742 = vmatprep.subr.bf16.mxu0 0
      %1743 = vmatpush1.bf16.msra.mxu0 0
      %1744 = vmatprep.subr.bf16.mxu0 0
      %1745 = vmatpush1.bf16.msra.mxu0 0
      %1746 = vmatprep.subr.bf16.mxu0 0
      %1747 = vmatpush1.bf16.msra.mxu0 0
      %1748 = vmatprep.subr.bf16.mxu0 0
      %1749 = vmatpush1.bf16.msra.mxu0 0
      %1750 = vmatprep.subr.bf16.mxu0 0
      %1751 = vmatpush1.bf16.msra.mxu0 0
      %1752 = vmatprep.subr.bf16.mxu0 0
      %1753 = vmatpush1.bf16.msra.mxu0 0
      %1754 = vmatprep.subr.bf16.mxu0 0
      %1755 = vmatpush1.bf16.msra.mxu0 0
      %1756 = vmatprep.subr.bf16.mxu0 0
      %1757 = vmatpush1.bf16.msra.mxu0 %v1738
      %1758 = vmatprep.subr.bf16.mxu0 0
      %1759 = vmatpush2.bf16.msra.mxu0 0
      %1760 = vmatprep.subr.bf16.mxu0 0
      %1761 = vmatpush2.bf16.msra.mxu0 0
      %1762 = vmatprep.subr.bf16.mxu0 0
      %1763 = vmatpush2.bf16.msra.mxu0 0
      %1764 = vmatprep.subr.bf16.mxu0 0
      %1765 = vmatpush2.bf16.msra.mxu0 0
      %1766 = vmatprep.subr.bf16.mxu0 0
      %1767 = vmatpush2.bf16.msra.mxu0 0
      %1768 = vmatprep.subr.bf16.mxu0 0
      %1769 = vmatpush2.bf16.msra.mxu0 0
      %1770 = vmatprep.subr.bf16.mxu0 0
      %1771 = vmatpush2.bf16.msra.mxu0 0
      %1772 = vmatprep.subr.bf16.mxu0 0
      %1773 = vmatpush2.bf16.msra.mxu0 0
      %1774 = vmatprep.mubr.bf16.mxu0 0
      %1775 = vmatmul.mubr.bf16.gmra.mxu0 %v1740
      %v1776 = vpop.f32.mrf.mxu0
      %v1777 = vadd.f32 0.0, %v1776
      %v1778 = vpop.f32.mrf.mxu0
      %v1779 = vpop.f32.mrf.mxu0
      %v1780 = vpop.f32.mrf.mxu0
      %1781 = vdwg.mxu0
      %v1782 = vld [vmem:[%s20] sm:$0xf]
      %v1783 = vld [vmem:[%s20 + $0x4] sm:$0xf]
      %v1784 = vld [vmem:[%s20 + $0x8] sm:$0xf]
      %v1785 = vld [vmem:[%s20 + $0xc] sm:$0xf]
      %v1786 = vpack.c.bf16 %v1777, %v1777
      %v1787 = vld [vmem:[%s21] sm:$0x1]
      %v1792 = vunpack.c.l.b16 %v1782
      %v1793 = vunpack.c.l.b16 %v1783
      %v1794 = vunpack.c.l.b16 %v1784
      %v1795 = vunpack.c.l.b16 %v1785
      %v1796 = vpack.c.b16 %v1793, %v1792
      %v1797 = vpack.c.b16 %v1795, %v1794
      %v1801 = vsel %vm916, %v1786, 0
      %1803 = vmatprep.subr.bf16.mxu0 0
      %1804 = vmatpush1.bf16.msra.mxu0 0
      %1805 = vmatprep.subr.bf16.mxu0 0
      %1806 = vmatpush1.bf16.msra.mxu0 0
      %1807 = vmatprep.subr.bf16.mxu0 0
      %1808 = vmatpush1.bf16.msra.mxu0 0
      %1809 = vmatprep.subr.bf16.mxu0 0
      %1810 = vmatpush1.bf16.msra.mxu0 0
      %1811 = vmatprep.subr.bf16.mxu0 0
      %1812 = vmatpush1.bf16.msra.mxu0 0
      %1813 = vmatprep.subr.bf16.mxu0 0
      %1814 = vmatpush1.bf16.msra.mxu0 0
      %1815 = vmatprep.subr.bf16.mxu0 0
      %1816 = vmatpush1.bf16.msra.mxu0 %v1797
      %1817 = vmatprep.subr.bf16.mxu0 0
      %1818 = vmatpush1.bf16.msra.mxu0 %v1796
      %1819 = vmatprep.subr.bf16.mxu0 0
      %1820 = vmatpush2.bf16.msra.mxu0 0
      %1821 = vmatprep.subr.bf16.mxu0 0
      %1822 = vmatpush2.bf16.msra.mxu0 0
      %1823 = vmatprep.subr.bf16.mxu0 0
      %1824 = vmatpush2.bf16.msra.mxu0 0
      %1825 = vmatprep.subr.bf16.mxu0 0
      %1826 = vmatpush2.bf16.msra.mxu0 0
      %1827 = vmatprep.subr.bf16.mxu0 0
      %1828 = vmatpush2.bf16.msra.mxu0 0
      %1829 = vmatprep.subr.bf16.mxu0 0
      %1830 = vmatpush2.bf16.msra.mxu0 0
      %1831 = vmatprep.subr.bf16.mxu0 0
      %1832 = vmatpush2.bf16.msra.mxu0 0
      %1833 = vmatprep.subr.bf16.mxu0 0
      %1834 = vmatpush2.bf16.msra.mxu0 0
      %1835 = vmatprep.mubr.bf16.mxu0 0
      %1836 = vmatmul.mubr.bf16.gmra.mxu0 %v1801
      %v1837 = vpop.f32.mrf.mxu0
      %v1838 = vadd.f32 %v1787, %v1837
      %v1839 = vpop.f32.mrf.mxu0
      %v1840 = vpop.f32.mrf.mxu0
      %v1841 = vpop.f32.mrf.mxu0
      %1842 = vdwg.mxu0
      %v1843 = vpack.c.bf16 %v1838, %v1838
      %v1845 = vsel %vm916, %v1843, 0
      %1847 = vmatprep.subr.bf16.mxu0 0
      %1848 = vmatpush1.bf16.xpose.msra.mxu0 0
      %1849 = vmatprep.subr.bf16.mxu0 0
      %1850 = vmatpush1.bf16.xpose.msra.mxu0 0
      %1851 = vmatprep.subr.bf16.mxu0 0
      %1852 = vmatpush1.bf16.xpose.msra.mxu0 0
      %1853 = vmatprep.subr.bf16.mxu0 0
      %1854 = vmatpush1.bf16.xpose.msra.mxu0 0
      %1855 = vmatprep.subr.bf16.mxu0 0
      %1856 = vmatpush1.bf16.xpose.msra.mxu0 0
      %1857 = vmatprep.subr.bf16.mxu0 0
      %1858 = vmatpush1.bf16.xpose.msra.mxu0 0
      %1859 = vmatprep.subr.bf16.mxu0 0
      %1860 = vmatpush1.bf16.xpose.msra.mxu0 0
      %1861 = vmatprep.subr.bf16.mxu0 0
      %1862 = vmatpush1.bf16.xpose.msra.mxu0 %v1633
      %1863 = vmatprep.subr.bf16.mxu0 0
      %1864 = vmatpush2.bf16.xpose.msra.mxu0 0
      %1865 = vmatprep.subr.bf16.mxu0 0
      %1866 = vmatpush2.bf16.xpose.msra.mxu0 0
      %1867 = vmatprep.subr.bf16.mxu0 0
      %1868 = vmatpush2.bf16.xpose.msra.mxu0 0
      %1869 = vmatprep.subr.bf16.mxu0 0
      %1870 = vmatpush2.bf16.xpose.msra.mxu0 0
      %1871 = vmatprep.subr.bf16.mxu0 0
      %1872 = vmatpush2.bf16.xpose.msra.mxu0 0
      %1873 = vmatprep.subr.bf16.mxu0 0
      %1874 = vmatpush2.bf16.xpose.msra.mxu0 0
      %1875 = vmatprep.subr.bf16.mxu0 0
      %1876 = vmatpush2.bf16.xpose.msra.mxu0 0
      %1877 = vmatprep.subr.bf16.mxu0 0
      %1878 = vmatpush2.bf16.xpose.msra.mxu0 0
      %1879 = vmatprep.mubr.bf16.mxu0 0
      %1880 = vmatmul.mubr.bf16.gmra.mxu0 %v1845
      %v1881 = vpop.f32.mrf.mxu0
      %v1882 = vadd.f32 0.0, %v1881
      %v1883 = vpop.f32.mrf.mxu0
      %v1884 = vpop.f32.mrf.mxu0
      %v1885 = vpop.f32.mrf.mxu0
      %1886 = vdwg.mxu0
      %vm1887 = vcmask 122880
      %1888 = vst.msk [vmem:[%s750] sm:$0x1] %vm1887, %v1882
      %p1889 = scmp.lt.s32.totalorder %s35, 1
      %s1890 = scalar_select %p1889, %s35, 1
      %s1891 = scalar_lea.vmem %s24, %s1890
      // Predicated region
      $region117: #{repsam_forward.1} parent=115 // pred_check
        %p1892 = pneg %p567
      $region118: #{repsam_forward.1} parent=115 // pred_check_branch
        %1894 = sbr.rel (%p1892) target = $region120
      $region119: #{repsam_forward.1} parent=115 // pred_region
        _
      $region120: #{repsam_forward.1} parent=115 // pred_fallthru
        _
    $region116: #{repsam_forward.1} parent=5 // pred_fallthru
      _
    %p1895 = scmp.le.s32.totalorder 2, %s30
    // Predicated region
    $region121: #{repsam_forward.1} parent=5 // pred_check
      %p1896 = pneg %p1895
    $region122: #{repsam_forward.1} parent=5 // pred_check_branch
      %1898 = sbr.rel (%p1896) target = $region124
    $region123: #{repsam_forward.1} parent=5 // pred_region
      %s1899 = ssub.s32 %s30, 2
      // Predicated region
      $region125: #{repsam_forward.1} parent=123 // pred_check
        %p1900 = pneg %p573
      $region126: #{repsam_forward.1} parent=123 // pred_check_branch
        %1902 = sbr.rel (%p1900) target = $region128
      $region127: #{repsam_forward.1} parent=123 // pred_region
        %p1903 = scmp.lt.s32.totalorder %s36, 1
        %s1904 = scalar_select %p1903, %s36, 1
        %s1905 = scalar_lea.vmem %s24, %s1904
      $region128: #{repsam_forward.1} parent=123 // pred_fallthru
        _
    $region124: #{repsam_forward.1} parent=5 // pred_fallthru
      _
  $region6: #{repsam_forward.1} parent=0 // loop_footer
    %s34 = sadd.s32 1, %s30
  $region7: #{repsam_forward.1} parent=0 // loop_footer_branch
    %29 = sbr.rel target = $region3
  $region8: #{repsam_forward.1} parent=0 // loop_exit
    _

</llo_original>
